<compile_context>
chip_gen: v7x
topology: tpu7x:2x2x1
jax: 0.10.0
libtpu: 0.0.40
codegen_flags: <defaults>
</compile_context>

<pallas_src>
from math import gcd

import jax
import jax.numpy as jnp
from jax.experimental import pallas as pl
from jax.experimental.pallas import tpu as pltpu

_EPS = 1e-5


def _round_up(a, b):
    return (a + b - 1) // b * b


# ------------------------------ kernel helpers ------------------------------

def _group_norm(h, mg, gamma, beta):
    """GroupNorm on a (TM, C) f32 tile.

    mg is the (C, C) group-averaging matrix (1/group_size inside a group,
    0 outside) so per-group mean / variance reductions run on the MXU and no
    lane-crossing reshape is needed.  Centered two-pass variance for accuracy.
    """
    mean = jnp.dot(h, mg, preferred_element_type=jnp.float32)
    hc = h - mean
    var = jnp.dot(hc * hc, mg, preferred_element_type=jnp.float32)
    return hc * jax.lax.rsqrt(var + _EPS) * gamma + beta


def _linear_res_kernel_transform(x_ref, w1_ref, w2_ref, wt_ref,
                                 g1_ref, b1_ref, g2_ref, b2_ref,
                                 gt_ref, bt_ref, mg_ref, o_ref):
    x = x_ref[...]                           # (TM, n_in) f32
    xb = x.astype(jnp.bfloat16)              # bf16 MXU operand, f32 accumulate
    mg = mg_ref[...]

    h = jnp.dot(xb, w1_ref[...], preferred_element_type=jnp.float32)
    h = _group_norm(h, mg, g1_ref[...], b1_ref[...])
    h = jnp.maximum(h, 0.0)
    h = jnp.dot(h.astype(jnp.bfloat16), w2_ref[...],
                preferred_element_type=jnp.float32)
    h = _group_norm(h, mg, g2_ref[...], b2_ref[...])

    r = jnp.dot(xb, wt_ref[...], preferred_element_type=jnp.float32)
    r = _group_norm(r, mg, gt_ref[...], bt_ref[...])

    o_ref[...] = jnp.maximum(h + r, 0.0).astype(o_ref.dtype)


def _linear_res_kernel_identity(x_ref, w1_ref, w2_ref,
                                g1_ref, b1_ref, g2_ref, b2_ref,
                                mg_ref, o_ref):
    x = x_ref[...]                           # (TM, C) f32
    xb = x.astype(jnp.bfloat16)
    mg = mg_ref[...]

    h = jnp.dot(xb, w1_ref[...], preferred_element_type=jnp.float32)
    h = _group_norm(h, mg, g1_ref[...], b1_ref[...])
    h = jnp.maximum(h, 0.0)
    h = jnp.dot(h.astype(jnp.bfloat16), w2_ref[...],
                preferred_element_type=jnp.float32)
    h = _group_norm(h, mg, g2_ref[...], b2_ref[...])

    o_ref[...] = jnp.maximum(h + x, 0.0).astype(o_ref.dtype)


# ------------------------------ python wrapper ------------------------------

def _group_avg_matrix(n_out, ng):
    groups = gcd(ng, n_out)
    gs = n_out // groups
    gid = jnp.arange(n_out) // gs
    return (gid[:, None] == gid[None, :]).astype(jnp.float32) / gs


def linear_res_forward(x, params, *, ng=32, block_m=256,
                       vmem_limit_bytes=48 * 1024 * 1024,
                       out_dtype=jnp.float32):
    """Pallas TPU implementation of LinearRes.forward (norm='GN').

    params holds PyTorch-layout weights: w1 (n_out, n_in), w2 (n_out, n_out),
    optional wt (n_out, n_in); GN affine g*/b* of shape (n_out,).
    """
    n, n_in = x.shape
    n_out = params["w1"].shape[0]
    has_transform = n_in != n_out

    # Row tiling: pad the batch so the grid divides evenly (pad rows sliced off).
    n_pad = _round_up(max(n, 8), 8)
    tm = _round_up(min(block_m, n_pad), 8)
    n_pad = _round_up(n_pad, tm)
    xp = x.astype(jnp.float32)
    if n_pad != n:
        xp = jnp.pad(xp, ((0, n_pad - n), (0, 0)))

    # Pre-cast matmul weights to bf16 (halves resident VMEM + HBM traffic);
    # transpose to (in, out) so the kernel does x @ W.  GN params stay f32.
    w1 = params["w1"].T.astype(jnp.bfloat16)
    w2 = params["w2"].T.astype(jnp.bfloat16)
    mg = _group_avg_matrix(n_out, ng)
    g1 = params["g1"].reshape(1, n_out).astype(jnp.float32)
    b1 = params["b1"].reshape(1, n_out).astype(jnp.float32)
    g2 = params["g2"].reshape(1, n_out).astype(jnp.float32)
    b2 = params["b2"].reshape(1, n_out).astype(jnp.float32)

    def row_spec(c):
        return pl.BlockSpec((tm, c), lambda i: (i, 0))

    def resident_spec(shape):
        return pl.BlockSpec(shape, lambda i: (0, 0))

    if has_transform:
        wt = params["wt"].T.astype(jnp.bfloat16)
        gt = params["gt"].reshape(1, n_out).astype(jnp.float32)
        bt = params["bt"].reshape(1, n_out).astype(jnp.float32)
        args = (xp, w1, w2, wt, g1, b1, g2, b2, gt, bt, mg)
        kernel = _linear_res_kernel_transform
        n_gn = 3
        matmul_flops = 2 * n_pad * (2 * n_in * n_out + n_out * n_out)
    else:
        args = (xp, w1, w2, g1, b1, g2, b2, mg)
        kernel = _linear_res_kernel_identity
        n_gn = 2
        matmul_flops = 2 * n_pad * (n_in * n_out + n_out * n_out)

    in_specs = [row_spec(n_in)] + [resident_spec(a.shape) for a in args[1:]]
    stats_flops = n_gn * 2 * (2 * n_pad * n_out * n_out)   # mean + var matmuls
    bytes_accessed = int(sum(a.size * a.dtype.itemsize for a in args)
                         + n_pad * n_out * jnp.dtype(out_dtype).itemsize)

    out = pl.pallas_call(
        kernel,
        out_shape=jax.ShapeDtypeStruct((n_pad, n_out), out_dtype),
        grid=(n_pad // tm,),
        in_specs=in_specs,
        out_specs=row_spec(n_out),
        compiler_params=pltpu.CompilerParams(
            dimension_semantics=("parallel",),
            vmem_limit_bytes=vmem_limit_bytes),
        cost_estimate=pl.CostEstimate(
            flops=int(matmul_flops + stats_flops),
            transcendentals=int(n_gn * n_pad * n_out),
            bytes_accessed=bytes_accessed),
    )(*args)
    return out[:n]


# ----------------------------- reference (JAX) ------------------------------

def _group_norm_ref(h, groups, gamma, beta):
    n, c = h.shape
    hg = h.reshape(n, groups, c // groups)
    mean = hg.mean(axis=-1, keepdims=True)
    var = hg.var(axis=-1, keepdims=True)
    hn = ((hg - mean) * jax.lax.rsqrt(var + _EPS)).reshape(n, c)
    return hn * gamma.reshape(1, c) + beta.reshape(1, c)


def linear_res_ref(x, params, *, ng=32):
    """Direct port of LinearRes.forward, mirroring the kernel's bf16 matmuls."""
    n_out = params["w1"].shape[0]
    n_in = x.shape[1]
    groups = gcd(ng, n_out)
    xb = x.astype(jnp.bfloat16)
    h = jnp.dot(xb, params["w1"].T.astype(jnp.bfloat16),
                preferred_element_type=jnp.float32)
    h = _group_norm_ref(h, groups, params["g1"], params["b1"])
    h = jnp.maximum(h, 0.0)
    h = jnp.dot(h.astype(jnp.bfloat16), params["w2"].T.astype(jnp.bfloat16),
                preferred_element_type=jnp.float32)
    h = _group_norm_ref(h, groups, params["g2"], params["b2"])
    if n_in != n_out:
        r = jnp.dot(xb, params["wt"].T.astype(jnp.bfloat16),
                    preferred_element_type=jnp.float32)
        r = _group_norm_ref(r, groups, params["gt"], params["bt"])
    else:
        r = x.astype(jnp.float32)
    return jnp.maximum(h + r, 0.0)


# ----------------------------------- main -----------------------------------

def _make_params(key, n_in, n_out):
    ks = jax.random.split(key, 9)
    p = {
        "w1": jax.random.normal(ks[0], (n_out, n_in), jnp.float32) * 0.1,
        "w2": jax.random.normal(ks[1], (n_out, n_out), jnp.float32) * 0.1,
        "g1": 1.0 + 0.1 * jax.random.normal(ks[2], (n_out,), jnp.float32),
        "b1": 0.1 * jax.random.normal(ks[3], (n_out,), jnp.float32),
        "g2": 1.0 + 0.1 * jax.random.normal(ks[4], (n_out,), jnp.float32),
        "b2": 0.1 * jax.random.normal(ks[5], (n_out,), jnp.float32),
    }
    if n_in != n_out:
        p["wt"] = jax.random.normal(ks[6], (n_out, n_in), jnp.float32) * 0.1
        p["gt"] = 1.0 + 0.1 * jax.random.normal(ks[7], (n_out,), jnp.float32)
        p["bt"] = 0.1 * jax.random.normal(ks[8], (n_out,), jnp.float32)
    return p


if __name__ == "__main__":
    key = jax.random.PRNGKey(0)
    kx1, kp1, kx2, kp2 = jax.random.split(key, 4)

    # Case 1: n_in != n_out -> residual goes through Linear + GroupNorm.
    # Lane-dense channel dims (multiples of 128); batch 200 exercises the
    # grid (TM=64 -> pad to 256 rows, 4 grid steps) and row padding.
    N1, n_in1, n_out1 = 200, 256, 128
    x1 = jax.random.normal(kx1, (N1, n_in1), jnp.float32)
    p1 = _make_params(kp1, n_in1, n_out1)
    out1 = jax.block_until_ready(
        linear_res_forward(x1, p1, ng=32, block_m=64))
    ref1 = linear_res_ref(x1, p1, ng=32)
    assert out1.shape == ref1.shape
    assert bool(jnp.all(jnp.isfinite(out1)))
    assert jnp.allclose(out1, ref1, atol=5e-2, rtol=5e-2), (
        "transform case mismatch, max abs diff = "
        f"{float(jnp.max(jnp.abs(out1 - ref1)))}")

    # Case 2: n_in == n_out -> identity residual.
    N2, n2 = 96, 128
    x2 = jax.random.normal(kx2, (N2, n2), jnp.float32)
    p2 = _make_params(kp2, n2, n2)
    out2 = jax.block_until_ready(
        linear_res_forward(x2, p2, ng=32, block_m=64))
    ref2 = linear_res_ref(x2, p2, ng=32)
    assert out2.shape == ref2.shape
    assert bool(jnp.all(jnp.isfinite(out2)))
    assert jnp.allclose(out2, ref2, atol=5e-2, rtol=5e-2), (
        "identity case mismatch, max abs diff = "
        f"{float(jnp.max(jnp.abs(out2 - ref2)))}")

    print("KERNEL_OK")
</pallas_src>

<mosaic_0001>
module attributes {stable_mosaic.version = 11 : i64} {
  func.func @_linear_res_kernel_transform(%arg0: i32, %arg1: memref<64x256xf32, #tpu.memory_space<vmem>>, %arg2: memref<256x128xbf16, #tpu.memory_space<vmem>>, %arg3: memref<128x128xbf16, #tpu.memory_space<vmem>>, %arg4: memref<256x128xbf16, #tpu.memory_space<vmem>>, %arg5: memref<1x128xf32, #tpu.memory_space<vmem>>, %arg6: memref<1x128xf32, #tpu.memory_space<vmem>>, %arg7: memref<1x128xf32, #tpu.memory_space<vmem>>, %arg8: memref<1x128xf32, #tpu.memory_space<vmem>>, %arg9: memref<1x128xf32, #tpu.memory_space<vmem>>, %arg10: memref<1x128xf32, #tpu.memory_space<vmem>>, %arg11: memref<128x128xf32, #tpu.memory_space<vmem>>, %arg12: memref<64x128xf32, #tpu.memory_space<vmem>>) attributes {dimension_semantics = [#tpu.dimension_semantics<parallel>], iteration_bounds = array<i64: 4>, scalar_prefetch = 0 : i64, scratch_operands = 0 : i64, tpu.core_type = #tpu.core_type<tc>, window_params = [{transform_indices = @transform_0, window_bounds = array<i64: 64, 256>}, {pipeline_mode = #tpu.pipeline_mode<synchronous>, transform_indices = @transform_1, window_bounds = array<i64: 256, 128>}, {pipeline_mode = #tpu.pipeline_mode<synchronous>, transform_indices = @transform_2, window_bounds = array<i64: 128, 128>}, {pipeline_mode = #tpu.pipeline_mode<synchronous>, transform_indices = @transform_3, window_bounds = array<i64: 256, 128>}, {pipeline_mode = #tpu.pipeline_mode<synchronous>, transform_indices = @transform_4, window_bounds = array<i64: 1, 128>}, {pipeline_mode = #tpu.pipeline_mode<synchronous>, transform_indices = @transform_5, window_bounds = array<i64: 1, 128>}, {pipeline_mode = #tpu.pipeline_mode<synchronous>, transform_indices = @transform_6, window_bounds = array<i64: 1, 128>}, {pipeline_mode = #tpu.pipeline_mode<synchronous>, transform_indices = @transform_7, window_bounds = array<i64: 1, 128>}, {pipeline_mode = #tpu.pipeline_mode<synchronous>, transform_indices = @transform_8, window_bounds = array<i64: 1, 128>}, {pipeline_mode = #tpu.pipeline_mode<synchronous>, transform_indices = @transform_9, window_bounds = array<i64: 1, 128>}, {pipeline_mode = #tpu.pipeline_mode<synchronous>, transform_indices = @transform_10, window_bounds = array<i64: 128, 128>}, {transform_indices = @transform_11, window_bounds = array<i64: 64, 128>}]} {
    %c0 = arith.constant 0 : index
    %c0_0 = arith.constant 0 : index
    %0 = vector.load %arg1[%c0, %c0_0] : memref<64x256xf32, #tpu.memory_space<vmem>>, vector<64x256xf32>
    %1 = arith.truncf %0 : vector<64x256xf32> to vector<64x256xbf16>
    %c0_1 = arith.constant 0 : index
    %c0_2 = arith.constant 0 : index
    %2 = vector.load %arg11[%c0_1, %c0_2] : memref<128x128xf32, #tpu.memory_space<vmem>>, vector<128x128xf32>
    %c0_3 = arith.constant 0 : index
    %c0_4 = arith.constant 0 : index
    %3 = vector.load %arg2[%c0_3, %c0_4] : memref<256x128xbf16, #tpu.memory_space<vmem>>, vector<256x128xbf16>
    %cst = arith.constant dense<0.000000e+00> : vector<64x128xf32>
    %4 = tpu.matmul %1, %3, %cst {dimension_numbers = #tpu.dot_dimension_numbers<[1], [0], [0], [1], [0, 0, 1, 1], [], []>} : vector<64x256xbf16>, vector<256x128xbf16>, vector<64x128xf32> -> vector<64x128xf32>
    %c0_5 = arith.constant 0 : index
    %c0_6 = arith.constant 0 : index
    %5 = vector.load %arg5[%c0_5, %c0_6] : memref<1x128xf32, #tpu.memory_space<vmem>>, vector<1x128xf32>
    %c0_7 = arith.constant 0 : index
    %c0_8 = arith.constant 0 : index
    %6 = vector.load %arg6[%c0_7, %c0_8] : memref<1x128xf32, #tpu.memory_space<vmem>>, vector<1x128xf32>
    %cst_9 = arith.constant dense<0.000000e+00> : vector<64x128xf32>
    %7 = tpu.matmul %4, %2, %cst_9 {dimension_numbers = #tpu.dot_dimension_numbers<[1], [0], [0], [1], [0, 0, 1, 1], [], []>} : vector<64x128xf32>, vector<128x128xf32>, vector<64x128xf32> -> vector<64x128xf32>
    %8 = arith.subf %4, %7 : vector<64x128xf32>
    %9 = arith.mulf %8, %8 : vector<64x128xf32>
    %cst_10 = arith.constant dense<0.000000e+00> : vector<64x128xf32>
    %10 = tpu.matmul %9, %2, %cst_10 {dimension_numbers = #tpu.dot_dimension_numbers<[1], [0], [0], [1], [0, 0, 1, 1], [], []>} : vector<64x128xf32>, vector<128x128xf32>, vector<64x128xf32> -> vector<64x128xf32>
    %cst_11 = arith.constant 9.99999974E-6 : f32
    %11 = vector.broadcast %cst_11 : f32 to vector<64x128xf32>
    %12 = arith.addf %10, %11 : vector<64x128xf32>
    %13 = math.rsqrt %12 : vector<64x128xf32>
    %14 = arith.mulf %8, %13 : vector<64x128xf32>
    %15 = vector.broadcast %5 : vector<1x128xf32> to vector<64x128xf32>
    %16 = arith.mulf %14, %15 : vector<64x128xf32>
    %17 = vector.broadcast %6 : vector<1x128xf32> to vector<64x128xf32>
    %18 = arith.addf %16, %17 : vector<64x128xf32>
    %cst_12 = arith.constant 0.000000e+00 : f32
    %19 = vector.broadcast %cst_12 : f32 to vector<64x128xf32>
    %20 = arith.maximumf %18, %19 : vector<64x128xf32>
    %21 = arith.truncf %20 : vector<64x128xf32> to vector<64x128xbf16>
    %c0_13 = arith.constant 0 : index
    %c0_14 = arith.constant 0 : index
    %22 = vector.load %arg3[%c0_13, %c0_14] : memref<128x128xbf16, #tpu.memory_space<vmem>>, vector<128x128xbf16>
    %cst_15 = arith.constant dense<0.000000e+00> : vector<64x128xf32>
    %23 = tpu.matmul %21, %22, %cst_15 {dimension_numbers = #tpu.dot_dimension_numbers<[1], [0], [0], [1], [0, 0, 1, 1], [], []>} : vector<64x128xbf16>, vector<128x128xbf16>, vector<64x128xf32> -> vector<64x128xf32>
    %c0_16 = arith.constant 0 : index
    %c0_17 = arith.constant 0 : index
    %24 = vector.load %arg7[%c0_16, %c0_17] : memref<1x128xf32, #tpu.memory_space<vmem>>, vector<1x128xf32>
    %c0_18 = arith.constant 0 : index
    %c0_19 = arith.constant 0 : index
    %25 = vector.load %arg8[%c0_18, %c0_19] : memref<1x128xf32, #tpu.memory_space<vmem>>, vector<1x128xf32>
    %cst_20 = arith.constant dense<0.000000e+00> : vector<64x128xf32>
    %26 = tpu.matmul %23, %2, %cst_20 {dimension_numbers = #tpu.dot_dimension_numbers<[1], [0], [0], [1], [0, 0, 1, 1], [], []>} : vector<64x128xf32>, vector<128x128xf32>, vector<64x128xf32> -> vector<64x128xf32>
    %27 = arith.subf %23, %26 : vector<64x128xf32>
    %28 = arith.mulf %27, %27 : vector<64x128xf32>
    %cst_21 = arith.constant dense<0.000000e+00> : vector<64x128xf32>
    %29 = tpu.matmul %28, %2, %cst_21 {dimension_numbers = #tpu.dot_dimension_numbers<[1], [0], [0], [1], [0, 0, 1, 1], [], []>} : vector<64x128xf32>, vector<128x128xf32>, vector<64x128xf32> -> vector<64x128xf32>
    %cst_22 = arith.constant 9.99999974E-6 : f32
    %30 = vector.broadcast %cst_22 : f32 to vector<64x128xf32>
    %31 = arith.addf %29, %30 : vector<64x128xf32>
    %32 = math.rsqrt %31 : vector<64x128xf32>
    %33 = arith.mulf %27, %32 : vector<64x128xf32>
    %34 = vector.broadcast %24 : vector<1x128xf32> to vector<64x128xf32>
    %35 = arith.mulf %33, %34 : vector<64x128xf32>
    %36 = vector.broadcast %25 : vector<1x128xf32> to vector<64x128xf32>
    %37 = arith.addf %35, %36 : vector<64x128xf32>
    %c0_23 = arith.constant 0 : index
    %c0_24 = arith.constant 0 : index
    %38 = vector.load %arg4[%c0_23, %c0_24] : memref<256x128xbf16, #tpu.memory_space<vmem>>, vector<256x128xbf16>
    %cst_25 = arith.constant dense<0.000000e+00> : vector<64x128xf32>
    %39 = tpu.matmul %1, %38, %cst_25 {dimension_numbers = #tpu.dot_dimension_numbers<[1], [0], [0], [1], [0, 0, 1, 1], [], []>} : vector<64x256xbf16>, vector<256x128xbf16>, vector<64x128xf32> -> vector<64x128xf32>
    %c0_26 = arith.constant 0 : index
    %c0_27 = arith.constant 0 : index
    %40 = vector.load %arg9[%c0_26, %c0_27] : memref<1x128xf32, #tpu.memory_space<vmem>>, vector<1x128xf32>
    %c0_28 = arith.constant 0 : index
    %c0_29 = arith.constant 0 : index
    %41 = vector.load %arg10[%c0_28, %c0_29] : memref<1x128xf32, #tpu.memory_space<vmem>>, vector<1x128xf32>
    %cst_30 = arith.constant dense<0.000000e+00> : vector<64x128xf32>
    %42 = tpu.matmul %39, %2, %cst_30 {dimension_numbers = #tpu.dot_dimension_numbers<[1], [0], [0], [1], [0, 0, 1, 1], [], []>} : vector<64x128xf32>, vector<128x128xf32>, vector<64x128xf32> -> vector<64x128xf32>
    %43 = arith.subf %39, %42 : vector<64x128xf32>
    %44 = arith.mulf %43, %43 : vector<64x128xf32>
    %cst_31 = arith.constant dense<0.000000e+00> : vector<64x128xf32>
    %45 = tpu.matmul %44, %2, %cst_31 {dimension_numbers = #tpu.dot_dimension_numbers<[1], [0], [0], [1], [0, 0, 1, 1], [], []>} : vector<64x128xf32>, vector<128x128xf32>, vector<64x128xf32> -> vector<64x128xf32>
    %cst_32 = arith.constant 9.99999974E-6 : f32
    %46 = vector.broadcast %cst_32 : f32 to vector<64x128xf32>
    %47 = arith.addf %45, %46 : vector<64x128xf32>
    %48 = math.rsqrt %47 : vector<64x128xf32>
    %49 = arith.mulf %43, %48 : vector<64x128xf32>
    %50 = vector.broadcast %40 : vector<1x128xf32> to vector<64x128xf32>
    %51 = arith.mulf %49, %50 : vector<64x128xf32>
    %52 = vector.broadcast %41 : vector<1x128xf32> to vector<64x128xf32>
    %53 = arith.addf %51, %52 : vector<64x128xf32>
    %54 = arith.addf %37, %53 : vector<64x128xf32>
    %cst_33 = arith.constant 0.000000e+00 : f32
    %55 = vector.broadcast %cst_33 : f32 to vector<64x128xf32>
    %56 = arith.maximumf %54, %55 : vector<64x128xf32>
    %c0_34 = arith.constant 0 : index
    %c0_35 = arith.constant 0 : index
    %57 = vector.load %arg12[%c0_34, %c0_35] : memref<64x128xf32, #tpu.memory_space<vmem>>, vector<64x128xf32>
    tpu.vector_store %arg12[%c0_34, %c0_35], %56 {strides = array<i32>} : memref<64x128xf32, #tpu.memory_space<vmem>>, vector<64x128xf32>,
    return
  }
  func.func @transform_0(%arg0: i32) -> (i32, i32) {
    %c0_i32 = arith.constant 0 : i32
    %c0_i32_0 = arith.constant 0 : i32
    return %arg0, %c0_i32 : i32, i32
  }
  func.func @transform_1(%arg0: i32) -> (i32, i32) {
    %c0_i32 = arith.constant 0 : i32
    %c0_i32_0 = arith.constant 0 : i32
    %c0_i32_1 = arith.constant 0 : i32
    return %c0_i32, %c0_i32_0 : i32, i32
  }
  func.func @transform_2(%arg0: i32) -> (i32, i32) {
    %c0_i32 = arith.constant 0 : i32
    %c0_i32_0 = arith.constant 0 : i32
    %c0_i32_1 = arith.constant 0 : i32
    return %c0_i32, %c0_i32_0 : i32, i32
  }
  func.func @transform_3(%arg0: i32) -> (i32, i32) {
    %c0_i32 = arith.constant 0 : i32
    %c0_i32_0 = arith.constant 0 : i32
    %c0_i32_1 = arith.constant 0 : i32
    return %c0_i32, %c0_i32_0 : i32, i32
  }
  func.func @transform_4(%arg0: i32) -> (i32, i32) {
    %c0_i32 = arith.constant 0 : i32
    %c0_i32_0 = arith.constant 0 : i32
    %c0_i32_1 = arith.constant 0 : i32
    return %c0_i32, %c0_i32_0 : i32, i32
  }
  func.func @transform_5(%arg0: i32) -> (i32, i32) {
    %c0_i32 = arith.constant 0 : i32
    %c0_i32_0 = arith.constant 0 : i32
    %c0_i32_1 = arith.constant 0 : i32
    return %c0_i32, %c0_i32_0 : i32, i32
  }
  func.func @transform_6(%arg0: i32) -> (i32, i32) {
    %c0_i32 = arith.constant 0 : i32
    %c0_i32_0 = arith.constant 0 : i32
    %c0_i32_1 = arith.constant 0 : i32
    return %c0_i32, %c0_i32_0 : i32, i32
  }
  func.func @transform_7(%arg0: i32) -> (i32, i32) {
    %c0_i32 = arith.constant 0 : i32
    %c0_i32_0 = arith.constant 0 : i32
    %c0_i32_1 = arith.constant 0 : i32
    return %c0_i32, %c0_i32_0 : i32, i32
  }
  func.func @transform_8(%arg0: i32) -> (i32, i32) {
    %c0_i32 = arith.constant 0 : i32
    %c0_i32_0 = arith.constant 0 : i32
    %c0_i32_1 = arith.constant 0 : i32
    return %c0_i32, %c0_i32_0 : i32, i32
  }
  func.func @transform_9(%arg0: i32) -> (i32, i32) {
    %c0_i32 = arith.constant 0 : i32
    %c0_i32_0 = arith.constant 0 : i32
    %c0_i32_1 = arith.constant 0 : i32
    return %c0_i32, %c0_i32_0 : i32, i32
  }
  func.func @transform_10(%arg0: i32) -> (i32, i32) {
    %c0_i32 = arith.constant 0 : i32
    %c0_i32_0 = arith.constant 0 : i32
    %c0_i32_1 = arith.constant 0 : i32
    return %c0_i32, %c0_i32_0 : i32, i32
  }
  func.func @transform_11(%arg0: i32) -> (i32, i32) {
    %c0_i32 = arith.constant 0 : i32
    %c0_i32_0 = arith.constant 0 : i32
    return %arg0, %c0_i32 : i32, i32
  }
}

</mosaic_0001>

<llo_original>
// kernel: tpu_custom_call.1
$region0: #{tpu_custom_call.1}
  #allocation0 [shape = 'u32[]', space=smem, size = 0x4, offset = 0x4, fixed_abs, tag = 'smem constant byte address 0x4 - core index']
  #allocation1 [shape = 'u32[144,128]{1,0:T(1,128)}', space=vmem, size = 0x12000, scoped, tag = 'internal scratch']
  %s0 = inlined_call_operand.hbm [shape: f32[256,256], index: 0, kind: input, shape index: {}]
  %s1 = inlined_call_operand.hbm [shape: bf16[256,128], index: 1, kind: input, shape index: {}]
  %s2 = inlined_call_operand.hbm [shape: bf16[128,128], index: 2, kind: input, shape index: {}]
  %s3 = inlined_call_operand.hbm [shape: bf16[256,128], index: 3, kind: input, shape index: {}]
  %s4 = inlined_call_operand.vmem [shape: f32[1,128], index: 4, kind: input, shape index: {}]
  %s5 = inlined_call_operand.vmem [shape: f32[1,128], index: 5, kind: input, shape index: {}]
  %s6 = inlined_call_operand.vmem [shape: f32[1,128], index: 6, kind: input, shape index: {}]
  %s7 = inlined_call_operand.vmem [shape: f32[1,128], index: 7, kind: input, shape index: {}]
  %s8 = inlined_call_operand.vmem [shape: f32[1,128], index: 8, kind: input, shape index: {}]
  %s9 = inlined_call_operand.vmem [shape: f32[1,128], index: 9, kind: input, shape index: {}]
  %s10 = inlined_call_operand.hbm [shape: f32[128,128], index: 10, kind: input, shape index: {}]
  %s11 = inlined_call_operand.hbm [shape: f32[256,128], index: 11, kind: output, shape index: {}]
  %s12 = sld [smem:[#allocation0]]
  $region97: #{tpu_custom_call.1} parent=0
    _
  %s14 = ssub.s32 1, %s12
  %s15 = scalar_select 0, %s14, %s12
  $region1: #{tpu_custom_call.1} parent=0
    #allocation2 [shape = 'u8[131072]{0}', space=vmem, size = 0x20000, scoped, tag = 'input window, operand 0']
    #allocation3 [shape = 's32[2]{0}', space=sflag, size = 0x8, scoped, tag = 'scoped memory for tpu_custom_call.1']
    #allocation4 [shape = 's32[2]{0}', space=sflag, size = 0x8, scoped, tag = 'scoped memory for tpu_custom_call.1']
    #allocation5 [shape = 'u8[65536]{0}', space=vmem, size = 0x10000, scoped, tag = 'input window, operand 1, single buffered']
    #allocation6 [shape = 's32[1]{0}', space=sflag, size = 0x4, scoped, tag = 'scoped memory for tpu_custom_call.1']
    #allocation7 [shape = 'u8[32768]{0}', space=vmem, size = 0x8000, scoped, tag = 'input window, operand 2, single buffered']
    #allocation8 [shape = 'u8[65536]{0}', space=vmem, size = 0x10000, scoped, tag = 'input window, operand 3, single buffered']
    #allocation9 [shape = 's32[1]{0}', space=sflag, size = 0x4, scoped, tag = 'scoped memory for tpu_custom_call.1']
    #allocation10 [shape = 'u8[65536]{0}', space=vmem, size = 0x10000, scoped, tag = 'input window, operand 10, single buffered']
    #allocation11 [shape = 'u8[65536]{0}', space=vmem, size = 0x10000, scoped, tag = 'output window, operand 0']
    %16 = vsyncpa [#allocation3], 0
    %s17 = scalar_lea.sflag [#allocation3], 1
    %18 = vsyncpa %s17, 0
    %19 = vsyncpa [#allocation6], 0
    %20 = vsyncpa [#allocation9], 0
    %21 = vsyncpa [#allocation4], 0
    %s22 = scalar_lea.sflag [#allocation4], 1
    %23 = vsyncpa %s22, 0
    loop: start=0, step=1, limit=6
    $region2: #{tpu_custom_call.1} parent=1 // loop_pre_header
      _
    $region3: #{tpu_custom_call.1} parent=1 // loop_header
      %s25 = sphi 0, %s29
      %p26 = scmp.ge.s32.totalorder %s25, 6
      %s35 = sphi 0, %s37
      %s38 = sphi 0, %s35
      %s39 = sphi 0, %s38
      %s55 = sphi 0, %s39
      %s59 = sphi 0, %s59
      %s61 = sphi 0, %s59
      %s62 = sphi 0, %s61
      %s76 = sphi 0, %s62
      %s80 = sphi 0, %s80
      %s82 = sphi 0, %s80
      %s83 = sphi 0, %s82
      %s97 = sphi 0, %s83
      %s101 = sphi 0, %s101
      %s103 = sphi 0, %s101
      %s104 = sphi 0, %s103
      %s118 = sphi 0, %s104
      %s122 = sphi 0, %s122
      %s124 = sphi 0, %s122
      %s125 = sphi 0, %s124
      %s139 = sphi 0, %s125
      %s143 = sphi 0, %s143
      %s145 = sphi 0, %s143
      %s146 = sphi 0, %s145
      %s160 = sphi 0, %s146
      %s164 = sphi 0, %s164
      %s166 = sphi 0, %s164
      %s167 = sphi 0, %s166
      %s181 = sphi 0, %s167
      %s185 = sphi 0, %s185
      %s187 = sphi 0, %s185
      %s188 = sphi 0, %s187
      %s202 = sphi 0, %s188
      %s206 = sphi 0, %s206
      %s208 = sphi 0, %s206
      %s209 = sphi 0, %s208
      %s223 = sphi 0, %s209
      %s227 = sphi 0, %s227
      %s229 = sphi 0, %s227
      %s230 = sphi 0, %s229
      %s244 = sphi 0, %s230
      %s248 = sphi 0, %s248
      %s250 = sphi 0, %s248
      %s251 = sphi 0, %s250
      %s265 = sphi 0, %s251
      %s271 = sphi 0, %s273
      %s274 = sphi 0, %s271
      %s275 = sphi 0, %s274
      %s291 = sphi 0, %s275
    $region4: #{tpu_custom_call.1} parent=1 // loop_header_branch
      %28 = sbr.rel (%p26) target = $region8
    $region5: #{tpu_custom_call.1} parent=1 // loop_body
      %s30 = ssub.s32 %s25, 1
      %s31 = ssub.s32 %s25, 2
      %s32 = sadd.s32 %s25, 1
      %s33 = ssub.s32 %s25, %s32
      %p34 = scmp.eq.s32.totalorder %s33, 0
      %s36 = sadd.s32 %s35, 1
      %s37 = scalar_select %p34, %s35, %s36
      %p40 = pneg %p34
      %p41 = scmp.eq.s32.totalorder %s25, 3
      %p42 = por %p40, %p41
      %p43 = scmp.ne.s32.totalorder %s35, %s38
      %p44 = scmp.eq.s32.totalorder %s25, 0
      %p45 = por %p43, %p44
      %p46 = scmp.ne.s32.totalorder %s35, %s38
      %p47 = scmp.eq.s32.totalorder %s30, 3
      %p48 = por %p46, %p47
      %p49 = scmp.ne.s32.totalorder %s38, %s39
      %p50 = scmp.eq.s32.totalorder %s30, 0
      %p51 = por %p49, %p50
      %p52 = scmp.ne.s32.totalorder %s38, %s39
      %p53 = scmp.eq.s32.totalorder %s31, 3
      %p54 = por %p52, %p53
      %p56 = scmp.ne.s32.totalorder %s39, %s55
      %p57 = scmp.eq.s32.totalorder %s31, 0
      %p58 = por %p56, %p57
      %s60 = sadd.s32 %s59, 1
      %p63 = scmp.eq.s32.totalorder %s25, 3
      %p64 = scmp.ne.s32.totalorder %s59, %s61
      %p65 = scmp.eq.s32.totalorder %s25, 0
      %p66 = por %p64, %p65
      %p67 = scmp.ne.s32.totalorder %s59, %s61
      %p68 = scmp.eq.s32.totalorder %s30, 3
      %p69 = por %p67, %p68
      %p70 = scmp.ne.s32.totalorder %s61, %s62
      %p71 = scmp.eq.s32.totalorder %s30, 0
      %p72 = por %p70, %p71
      %p73 = scmp.ne.s32.totalorder %s61, %s62
      %p74 = scmp.eq.s32.totalorder %s31, 3
      %p75 = por %p73, %p74
      %p77 = scmp.ne.s32.totalorder %s62, %s76
      %p78 = scmp.eq.s32.totalorder %s31, 0
      %p79 = por %p77, %p78
      %s81 = sadd.s32 %s80, 1
      %p84 = scmp.eq.s32.totalorder %s25, 3
      %p85 = scmp.ne.s32.totalorder %s80, %s82
      %p86 = scmp.eq.s32.totalorder %s25, 0
      %p87 = por %p85, %p86
      %p88 = scmp.ne.s32.totalorder %s80, %s82
      %p89 = scmp.eq.s32.totalorder %s30, 3
      %p90 = por %p88, %p89
      %p91 = scmp.ne.s32.totalorder %s82, %s83
      %p92 = scmp.eq.s32.totalorder %s30, 0
      %p93 = por %p91, %p92
      %p94 = scmp.ne.s32.totalorder %s82, %s83
      %p95 = scmp.eq.s32.totalorder %s31, 3
      %p96 = por %p94, %p95
      %p98 = scmp.ne.s32.totalorder %s83, %s97
      %p99 = scmp.eq.s32.totalorder %s31, 0
      %p100 = por %p98, %p99
      %s102 = sadd.s32 %s101, 1
      %p105 = scmp.eq.s32.totalorder %s25, 3
      %p106 = scmp.ne.s32.totalorder %s101, %s103
      %p107 = scmp.eq.s32.totalorder %s25, 0
      %p108 = por %p106, %p107
      %p109 = scmp.ne.s32.totalorder %s101, %s103
      %p110 = scmp.eq.s32.totalorder %s30, 3
      %p111 = por %p109, %p110
      %p112 = scmp.ne.s32.totalorder %s103, %s104
      %p113 = scmp.eq.s32.totalorder %s30, 0
      %p114 = por %p112, %p113
      %p115 = scmp.ne.s32.totalorder %s103, %s104
      %p116 = scmp.eq.s32.totalorder %s31, 3
      %p117 = por %p115, %p116
      %p119 = scmp.ne.s32.totalorder %s104, %s118
      %p120 = scmp.eq.s32.totalorder %s31, 0
      %p121 = por %p119, %p120
      %s123 = sadd.s32 %s122, 1
      %p126 = scmp.eq.s32.totalorder %s25, 3
      %p127 = scmp.ne.s32.totalorder %s122, %s124
      %p128 = scmp.eq.s32.totalorder %s25, 0
      %p129 = por %p127, %p128
      %p130 = scmp.ne.s32.totalorder %s122, %s124
      %p131 = scmp.eq.s32.totalorder %s30, 3
      %p132 = por %p130, %p131
      %p133 = scmp.ne.s32.totalorder %s124, %s125
      %p134 = scmp.eq.s32.totalorder %s30, 0
      %p135 = por %p133, %p134
      %p136 = scmp.ne.s32.totalorder %s124, %s125
      %p137 = scmp.eq.s32.totalorder %s31, 3
      %p138 = por %p136, %p137
      %p140 = scmp.ne.s32.totalorder %s125, %s139
      %p141 = scmp.eq.s32.totalorder %s31, 0
      %p142 = por %p140, %p141
      %s144 = sadd.s32 %s143, 1
      %p147 = scmp.eq.s32.totalorder %s25, 3
      %p148 = scmp.ne.s32.totalorder %s143, %s145
      %p149 = scmp.eq.s32.totalorder %s25, 0
      %p150 = por %p148, %p149
      %p151 = scmp.ne.s32.totalorder %s143, %s145
      %p152 = scmp.eq.s32.totalorder %s30, 3
      %p153 = por %p151, %p152
      %p154 = scmp.ne.s32.totalorder %s145, %s146
      %p155 = scmp.eq.s32.totalorder %s30, 0
      %p156 = por %p154, %p155
      %p157 = scmp.ne.s32.totalorder %s145, %s146
      %p158 = scmp.eq.s32.totalorder %s31, 3
      %p159 = por %p157, %p158
      %p161 = scmp.ne.s32.totalorder %s146, %s160
      %p162 = scmp.eq.s32.totalorder %s31, 0
      %p163 = por %p161, %p162
      %s165 = sadd.s32 %s164, 1
      %p168 = scmp.eq.s32.totalorder %s25, 3
      %p169 = scmp.ne.s32.totalorder %s164, %s166
      %p170 = scmp.eq.s32.totalorder %s25, 0
      %p171 = por %p169, %p170
      %p172 = scmp.ne.s32.totalorder %s164, %s166
      %p173 = scmp.eq.s32.totalorder %s30, 3
      %p174 = por %p172, %p173
      %p175 = scmp.ne.s32.totalorder %s166, %s167
      %p176 = scmp.eq.s32.totalorder %s30, 0
      %p177 = por %p175, %p176
      %p178 = scmp.ne.s32.totalorder %s166, %s167
      %p179 = scmp.eq.s32.totalorder %s31, 3
      %p180 = por %p178, %p179
      %p182 = scmp.ne.s32.totalorder %s167, %s181
      %p183 = scmp.eq.s32.totalorder %s31, 0
      %p184 = por %p182, %p183
      %s186 = sadd.s32 %s185, 1
      %p189 = scmp.eq.s32.totalorder %s25, 3
      %p190 = scmp.ne.s32.totalorder %s185, %s187
      %p191 = scmp.eq.s32.totalorder %s25, 0
      %p192 = por %p190, %p191
      %p193 = scmp.ne.s32.totalorder %s185, %s187
      %p194 = scmp.eq.s32.totalorder %s30, 3
      %p195 = por %p193, %p194
      %p196 = scmp.ne.s32.totalorder %s187, %s188
      %p197 = scmp.eq.s32.totalorder %s30, 0
      %p198 = por %p196, %p197
      %p199 = scmp.ne.s32.totalorder %s187, %s188
      %p200 = scmp.eq.s32.totalorder %s31, 3
      %p201 = por %p199, %p200
      %p203 = scmp.ne.s32.totalorder %s188, %s202
      %p204 = scmp.eq.s32.totalorder %s31, 0
      %p205 = por %p203, %p204
      %s207 = sadd.s32 %s206, 1
      %p210 = scmp.eq.s32.totalorder %s25, 3
      %p211 = scmp.ne.s32.totalorder %s206, %s208
      %p212 = scmp.eq.s32.totalorder %s25, 0
      %p213 = por %p211, %p212
      %p214 = scmp.ne.s32.totalorder %s206, %s208
      %p215 = scmp.eq.s32.totalorder %s30, 3
      %p216 = por %p214, %p215
      %p217 = scmp.ne.s32.totalorder %s208, %s209
      %p218 = scmp.eq.s32.totalorder %s30, 0
      %p219 = por %p217, %p218
      %p220 = scmp.ne.s32.totalorder %s208, %s209
      %p221 = scmp.eq.s32.totalorder %s31, 3
      %p222 = por %p220, %p221
      %p224 = scmp.ne.s32.totalorder %s209, %s223
      %p225 = scmp.eq.s32.totalorder %s31, 0
      %p226 = por %p224, %p225
      %s228 = sadd.s32 %s227, 1
      %p231 = scmp.eq.s32.totalorder %s25, 3
      %p232 = scmp.ne.s32.totalorder %s227, %s229
      %p233 = scmp.eq.s32.totalorder %s25, 0
      %p234 = por %p232, %p233
      %p235 = scmp.ne.s32.totalorder %s227, %s229
      %p236 = scmp.eq.s32.totalorder %s30, 3
      %p237 = por %p235, %p236
      %p238 = scmp.ne.s32.totalorder %s229, %s230
      %p239 = scmp.eq.s32.totalorder %s30, 0
      %p240 = por %p238, %p239
      %p241 = scmp.ne.s32.totalorder %s229, %s230
      %p242 = scmp.eq.s32.totalorder %s31, 3
      %p243 = por %p241, %p242
      %p245 = scmp.ne.s32.totalorder %s230, %s244
      %p246 = scmp.eq.s32.totalorder %s31, 0
      %p247 = por %p245, %p246
      %s249 = sadd.s32 %s248, 1
      %p252 = scmp.eq.s32.totalorder %s25, 3
      %p253 = scmp.ne.s32.totalorder %s248, %s250
      %p254 = scmp.eq.s32.totalorder %s25, 0
      %p255 = por %p253, %p254
      %p256 = scmp.ne.s32.totalorder %s248, %s250
      %p257 = scmp.eq.s32.totalorder %s30, 3
      %p258 = por %p256, %p257
      %p259 = scmp.ne.s32.totalorder %s250, %s251
      %p260 = scmp.eq.s32.totalorder %s30, 0
      %p261 = por %p259, %p260
      %p262 = scmp.ne.s32.totalorder %s250, %s251
      %p263 = scmp.eq.s32.totalorder %s31, 3
      %p264 = por %p262, %p263
      %p266 = scmp.ne.s32.totalorder %s251, %s265
      %p267 = scmp.eq.s32.totalorder %s31, 0
      %p268 = por %p266, %p267
      %s269 = ssub.s32 %s25, %s32
      %p270 = scmp.eq.s32.totalorder %s269, 0
      %s272 = sadd.s32 %s271, 1
      %s273 = scalar_select %p270, %s271, %s272
      %p276 = pneg %p270
      %p277 = scmp.eq.s32.totalorder %s25, 3
      %p278 = por %p276, %p277
      %p279 = scmp.ne.s32.totalorder %s271, %s274
      %p280 = scmp.eq.s32.totalorder %s25, 0
      %p281 = por %p279, %p280
      %p282 = scmp.ne.s32.totalorder %s271, %s274
      %p283 = scmp.eq.s32.totalorder %s30, 3
      %p284 = por %p282, %p283
      %p285 = scmp.ne.s32.totalorder %s274, %s275
      %p286 = scmp.eq.s32.totalorder %s30, 0
      %p287 = por %p285, %p286
      %p288 = scmp.ne.s32.totalorder %s274, %s275
      %p289 = scmp.eq.s32.totalorder %s31, 3
      %p290 = por %p288, %p289
      %p292 = scmp.ne.s32.totalorder %s275, %s291
      %p293 = scmp.eq.s32.totalorder %s31, 0
      %p294 = por %p292, %p293
      %p295 = scmp.le.s32.totalorder 1, %s25
      %p296 = scmp.lt.s32.totalorder %s25, 5
      %p297 = pnand %p295, %p296
      %p298 = pneg %p297
      // Predicated region
      $region9: #{tpu_custom_call.1} parent=5 // pred_check
        _
      $region10: #{tpu_custom_call.1} parent=5 // pred_check_branch
        %300 = sbr.rel (%p297) target = $region12
      $region11: #{tpu_custom_call.1} parent=5 // pred_region
        %s301 = ssub.s32 %s25, 1
        // Predicated region
        $region13: #{tpu_custom_call.1} parent=11 // pred_check
          %p302 = pneg %p72
        $region14: #{tpu_custom_call.1} parent=11 // pred_check_branch
          %304 = sbr.rel (%p302) target = $region16
        $region15: #{tpu_custom_call.1} parent=11 // pred_region
          %s306 = ssub.s32 2048, 2048
          %307 = vsyncadd [#allocation6], %s306
          %s308 = sshll.u32 [#allocation5], 4
          %s309 = int_to_ptr.vmem [resolvable:$true] %s308
          %314 = dma.hbm_to_vmem [thread:$0]  %s1, 2048, %s309, [#allocation6], 64, 64, 4
        $region16: #{tpu_custom_call.1} parent=11 // pred_fallthru
          _
        // Predicated region
        $region17: #{tpu_custom_call.1} parent=11 // pred_check
          %p315 = pneg %p93
        $region18: #{tpu_custom_call.1} parent=11 // pred_check_branch
          %317 = sbr.rel (%p315) target = $region20
        $region19: #{tpu_custom_call.1} parent=11 // pred_region
          %s319 = ssub.s32 1024, 1024
          %320 = vsyncadd [#allocation6], %s319
          %s321 = sshll.u32 [#allocation7], 4
          %s322 = int_to_ptr.vmem [resolvable:$true] %s321
          %327 = dma.hbm_to_vmem [thread:$0]  %s2, 1024, %s322, [#allocation6], 64, 64, 4
        $region20: #{tpu_custom_call.1} parent=11 // pred_fallthru
          _
        // Predicated region
        $region21: #{tpu_custom_call.1} parent=11 // pred_check
          %p328 = pneg %p114
        $region22: #{tpu_custom_call.1} parent=11 // pred_check_branch
          %330 = sbr.rel (%p328) target = $region24
        $region23: #{tpu_custom_call.1} parent=11 // pred_region
          %s332 = ssub.s32 2048, 2048
          %333 = vsyncadd [#allocation9], %s332
          %s334 = sshll.u32 [#allocation8], 4
          %s335 = int_to_ptr.vmem [resolvable:$true] %s334
          %340 = dma.hbm_to_vmem [thread:$0]  %s3, 2048, %s335, [#allocation9], 64, 64, 4
        $region24: #{tpu_custom_call.1} parent=11 // pred_fallthru
          _
        // Predicated region
        $region25: #{tpu_custom_call.1} parent=11 // pred_check
          %p341 = pneg %p135
        $region26: #{tpu_custom_call.1} parent=11 // pred_check_branch
          %343 = sbr.rel (%p341) target = $region28
        $region27: #{tpu_custom_call.1} parent=11 // pred_region
          _
        $region28: #{tpu_custom_call.1} parent=11 // pred_fallthru
          _
        // Predicated region
        $region29: #{tpu_custom_call.1} parent=11 // pred_check
          %p344 = pneg %p156
        $region30: #{tpu_custom_call.1} parent=11 // pred_check_branch
          %346 = sbr.rel (%p344) target = $region32
        $region31: #{tpu_custom_call.1} parent=11 // pred_region
          _
        $region32: #{tpu_custom_call.1} parent=11 // pred_fallthru
          _
        // Predicated region
        $region33: #{tpu_custom_call.1} parent=11 // pred_check
          %p347 = pneg %p177
        $region34: #{tpu_custom_call.1} parent=11 // pred_check_branch
          %349 = sbr.rel (%p347) target = $region36
        $region35: #{tpu_custom_call.1} parent=11 // pred_region
          _
        $region36: #{tpu_custom_call.1} parent=11 // pred_fallthru
          _
        // Predicated region
        $region37: #{tpu_custom_call.1} parent=11 // pred_check
          %p350 = pneg %p198
        $region38: #{tpu_custom_call.1} parent=11 // pred_check_branch
          %352 = sbr.rel (%p350) target = $region40
        $region39: #{tpu_custom_call.1} parent=11 // pred_region
          _
        $region40: #{tpu_custom_call.1} parent=11 // pred_fallthru
          _
        // Predicated region
        $region41: #{tpu_custom_call.1} parent=11 // pred_check
          %p353 = pneg %p219
        $region42: #{tpu_custom_call.1} parent=11 // pred_check_branch
          %355 = sbr.rel (%p353) target = $region44
        $region43: #{tpu_custom_call.1} parent=11 // pred_region
          _
        $region44: #{tpu_custom_call.1} parent=11 // pred_fallthru
          _
        // Predicated region
        $region45: #{tpu_custom_call.1} parent=11 // pred_check
          %p356 = pneg %p240
        $region46: #{tpu_custom_call.1} parent=11 // pred_check_branch
          %358 = sbr.rel (%p356) target = $region48
        $region47: #{tpu_custom_call.1} parent=11 // pred_region
          _
        $region48: #{tpu_custom_call.1} parent=11 // pred_fallthru
          _
        // Predicated region
        $region49: #{tpu_custom_call.1} parent=11 // pred_check
          %p359 = pneg %p261
        $region50: #{tpu_custom_call.1} parent=11 // pred_check_branch
          %361 = sbr.rel (%p359) target = $region52
        $region51: #{tpu_custom_call.1} parent=11 // pred_region
          %s363 = ssub.s32 2048, 2048
          %364 = vsyncadd [#allocation9], %s363
          %s365 = sshll.u32 [#allocation10], 4
          %s366 = int_to_ptr.vmem [resolvable:$true] %s365
          %371 = dma.hbm_to_vmem [thread:$0]  %s10, 2048, %s366, [#allocation9], 128, 128, 8
        $region52: #{tpu_custom_call.1} parent=11 // pred_fallthru
          _
      $region12: #{tpu_custom_call.1} parent=5 // pred_fallthru
        _
      %p372 = scmp.lt.s32.totalorder %s25, 4
      // Predicated region
      $region53: #{tpu_custom_call.1} parent=5 // pred_check
        %p373 = pneg %p372
      $region54: #{tpu_custom_call.1} parent=5 // pred_check_branch
        %375 = sbr.rel (%p373) target = $region56
      $region55: #{tpu_custom_call.1} parent=5 // pred_region
        // Predicated region
        $region57: #{tpu_custom_call.1} parent=55 // pred_check
          %p376 = pneg %p45
        $region58: #{tpu_custom_call.1} parent=55 // pred_check_branch
          %378 = sbr.rel (%p376) target = $region60
        $region59: #{tpu_custom_call.1} parent=55 // pred_region
          %s379 = sand.u32 %s35, 1
          %s380 = scalar_lea.sflag [#allocation3], %s379
          %s381 = sand.u32 %s35, 1
          %s382 = smul.addr %s381, 128
          %s383 = scalar_lea.vmem [#allocation2], %s382
          %s384 = smul.u32 8, %s25
          %s386 = ssub.s32 2048, 2048
          %387 = vsyncadd %s380, %s386
          %s388 = smul.addr %s384, 2
          %s389 = smul.addr %s388, 128
          %s390 = scalar_lea.hbm %s0, %s389
          %s391 = sshll.u32 %s383, 4
          %s392 = int_to_ptr.vmem [resolvable:$true] %s391
          %397 = dma.hbm_to_vmem [thread:$0]  %s390, 2048, %s392, %s380, 256, 256, 16
        $region60: #{tpu_custom_call.1} parent=55 // pred_fallthru
          _
      $region56: #{tpu_custom_call.1} parent=5 // pred_fallthru
        _
      %p398 = scmp.le.s32.totalorder 1, %s25
      %p399 = scmp.lt.s32.totalorder %s25, 5
      %p400 = pnand %p398, %p399
      %p401 = pneg %p400
      // Predicated region
      $region61: #{tpu_custom_call.1} parent=5 // pred_check
        _
      $region62: #{tpu_custom_call.1} parent=5 // pred_check_branch
        %403 = sbr.rel (%p400) target = $region64
      $region63: #{tpu_custom_call.1} parent=5 // pred_region
        %s404 = ssub.s32 %s25, 1
        %s405 = sand.u32 %s38, 1
        %s406 = scalar_lea.sflag [#allocation3], %s405
        %s407 = sand.u32 %s38, 1
        %s408 = smul.addr %s407, 128
        %s409 = scalar_lea.vmem [#allocation2], %s408
        // Predicated region
        $region65: #{tpu_custom_call.1} parent=63 // pred_check
          %p410 = pneg %p51
        $region66: #{tpu_custom_call.1} parent=63 // pred_check_branch
          %412 = sbr.rel (%p410) target = $region68
        $region67: #{tpu_custom_call.1} parent=63 // pred_region
          %413 = dma.done %s406, 2048
        $region68: #{tpu_custom_call.1} parent=63 // pred_fallthru
          _
        // Predicated region
        $region69: #{tpu_custom_call.1} parent=63 // pred_check
          %p414 = pneg %p72
        $region70: #{tpu_custom_call.1} parent=63 // pred_check_branch
          %416 = sbr.rel (%p414) target = $region72
        $region71: #{tpu_custom_call.1} parent=63 // pred_region
          %417 = dma.done [#allocation6], 2048
        $region72: #{tpu_custom_call.1} parent=63 // pred_fallthru
          _
        // Predicated region
        $region73: #{tpu_custom_call.1} parent=63 // pred_check
          %p418 = pneg %p93
        $region74: #{tpu_custom_call.1} parent=63 // pred_check_branch
          %420 = sbr.rel (%p418) target = $region76
        $region75: #{tpu_custom_call.1} parent=63 // pred_region
          %421 = dma.done [#allocation6], 1024
        $region76: #{tpu_custom_call.1} parent=63 // pred_fallthru
          _
        // Predicated region
        $region77: #{tpu_custom_call.1} parent=63 // pred_check
          %p422 = pneg %p114
        $region78: #{tpu_custom_call.1} parent=63 // pred_check_branch
          %424 = sbr.rel (%p422) target = $region80
        $region79: #{tpu_custom_call.1} parent=63 // pred_region
          %425 = dma.done [#allocation9], 2048
        $region80: #{tpu_custom_call.1} parent=63 // pred_fallthru
          _
        // Predicated region
        $region81: #{tpu_custom_call.1} parent=63 // pred_check
          %p426 = pneg %p261
        $region82: #{tpu_custom_call.1} parent=63 // pred_check_branch
          %428 = sbr.rel (%p426) target = $region84
        $region83: #{tpu_custom_call.1} parent=63 // pred_region
          %429 = dma.done [#allocation9], 2048
        $region84: #{tpu_custom_call.1} parent=63 // pred_fallthru
          _
        %s430 = sand.u32 %s38, 1
        %s431 = scalar_lea.sflag [#allocation3], %s430
        %s432 = sand.u32 %s38, 1
        %s433 = smul.addr %s432, 128
        %s434 = scalar_lea.vmem [#allocation2], %s433
        %p435 = pneg %p51
        %p436 = pneg %p48
        %p437 = pneg %p72
        %p438 = pneg %p69
        %p439 = pneg %p93
        %p440 = pneg %p90
        %p441 = pneg %p114
        %p442 = pneg %p111
        %p443 = pneg %p135
        %p444 = pneg %p132
        %p445 = pneg %p156
        %p446 = pneg %p153
        %p447 = pneg %p177
        %p448 = pneg %p174
        %p449 = pneg %p198
        %p450 = pneg %p195
        %p451 = pneg %p219
        %p452 = pneg %p216
        %p453 = pneg %p240
        %p454 = pneg %p237
        %p455 = pneg %p261
        %p456 = pneg %p258
        %p457 = pneg %p287
        %p458 = pneg %p284
        %s459 = sand.u32 %s274, 1
        %s460 = scalar_lea.sflag [#allocation4], %s459
        %s461 = sand.u32 %s274, 1
        %s462 = smul.addr %s461, 64
        %s463 = scalar_lea.vmem [#allocation11], %s462
        %s464 = smul.u32 8, %s30
        %s465 = smul.u32 8, %s30
        %v467 = vld [vmem:[%s409] sm:$0xff]
        %v468 = vld [vmem:[%s409 + $0x8] sm:$0xff]
        %v469 = vld [vmem:[%s409 + $0x10] sm:$0xff]
        %v470 = vld [vmem:[%s409 + $0x18] sm:$0xff]
        %v471 = vld [vmem:[%s409 + $0x20] sm:$0xff]
        %v472 = vld [vmem:[%s409 + $0x28] sm:$0xff]
        %v473 = vld [vmem:[%s409 + $0x30] sm:$0xff]
        %v474 = vld [vmem:[%s409 + $0x38] sm:$0xff]
        %v475 = vld [vmem:[%s409 + $0x40] sm:$0xff]
        %v476 = vld [vmem:[%s409 + $0x48] sm:$0xff]
        %v477 = vld [vmem:[%s409 + $0x50] sm:$0xff]
        %v478 = vld [vmem:[%s409 + $0x58] sm:$0xff]
        %v479 = vld [vmem:[%s409 + $0x60] sm:$0xff]
        %v480 = vld [vmem:[%s409 + $0x68] sm:$0xff]
        %v481 = vld [vmem:[%s409 + $0x70] sm:$0xff]
        %v482 = vld [vmem:[%s409 + $0x78] sm:$0xff]
        %v483 = vpack.c.bf16 %v469, %v467
        %v484 = vpack.c.bf16 %v470, %v468
        %v485 = vpack.c.bf16 %v473, %v471
        %v486 = vpack.c.bf16 %v474, %v472
        %v487 = vpack.c.bf16 %v477, %v475
        %v488 = vpack.c.bf16 %v478, %v476
        %v489 = vpack.c.bf16 %v481, %v479
        %v490 = vpack.c.bf16 %v482, %v480
        %v491 = vld [vmem:[#allocation10] sm:$0xff]
        %v492 = vld [vmem:[#allocation10 + $0x8] sm:$0xff]
        %v493 = vld [vmem:[#allocation10 + $0x10] sm:$0xff]
        %v494 = vld [vmem:[#allocation10 + $0x18] sm:$0xff]
        %v495 = vld [vmem:[#allocation10 + $0x20] sm:$0xff]
        %v496 = vld [vmem:[#allocation10 + $0x28] sm:$0xff]
        %v497 = vld [vmem:[#allocation10 + $0x30] sm:$0xff]
        %v498 = vld [vmem:[#allocation10 + $0x38] sm:$0xff]
        %v499 = vld [vmem:[#allocation10 + $0x40] sm:$0xff]
        %v500 = vld [vmem:[#allocation10 + $0x48] sm:$0xff]
        %v501 = vld [vmem:[#allocation10 + $0x50] sm:$0xff]
        %v502 = vld [vmem:[#allocation10 + $0x58] sm:$0xff]
        %v503 = vld [vmem:[#allocation10 + $0x60] sm:$0xff]
        %v504 = vld [vmem:[#allocation10 + $0x68] sm:$0xff]
        %v505 = vld [vmem:[#allocation10 + $0x70] sm:$0xff]
        %v506 = vld [vmem:[#allocation10 + $0x78] sm:$0xff]
        %v507 = vld [vmem:[#allocation5] sm:$0xf]
        %v508 = vld [vmem:[#allocation5 + $0x4] sm:$0xf]
        %v509 = vld [vmem:[#allocation5 + $0x8] sm:$0xf]
        %v510 = vld [vmem:[#allocation5 + $0xc] sm:$0xf]
        %v511 = vld [vmem:[#allocation5 + $0x10] sm:$0xf]
        %v512 = vld [vmem:[#allocation5 + $0x14] sm:$0xf]
        %v513 = vld [vmem:[#allocation5 + $0x18] sm:$0xf]
        %v514 = vld [vmem:[#allocation5 + $0x1c] sm:$0xf]
        %v515 = vld [vmem:[#allocation5 + $0x20] sm:$0xf]
        %v516 = vld [vmem:[#allocation5 + $0x24] sm:$0xf]
        %v517 = vld [vmem:[#allocation5 + $0x28] sm:$0xf]
        %v518 = vld [vmem:[#allocation5 + $0x2c] sm:$0xf]
        %v519 = vld [vmem:[#allocation5 + $0x30] sm:$0xf]
        %v520 = vld [vmem:[#allocation5 + $0x34] sm:$0xf]
        %v521 = vld [vmem:[#allocation5 + $0x38] sm:$0xf]
        %v522 = vld [vmem:[#allocation5 + $0x3c] sm:$0xf]
        %v523 = vld [vmem:[#allocation5 + $0x40] sm:$0xf]
        %v524 = vld [vmem:[#allocation5 + $0x44] sm:$0xf]
        %v525 = vld [vmem:[#allocation5 + $0x48] sm:$0xf]
        %v526 = vld [vmem:[#allocation5 + $0x4c] sm:$0xf]
        %v527 = vld [vmem:[#allocation5 + $0x50] sm:$0xf]
        %v528 = vld [vmem:[#allocation5 + $0x54] sm:$0xf]
        %v529 = vld [vmem:[#allocation5 + $0x58] sm:$0xf]
        %v530 = vld [vmem:[#allocation5 + $0x5c] sm:$0xf]
        %v531 = vld [vmem:[#allocation5 + $0x60] sm:$0xf]
        %v532 = vld [vmem:[#allocation5 + $0x64] sm:$0xf]
        %v533 = vld [vmem:[#allocation5 + $0x68] sm:$0xf]
        %v534 = vld [vmem:[#allocation5 + $0x6c] sm:$0xf]
        %v535 = vld [vmem:[#allocation5 + $0x70] sm:$0xf]
        %v536 = vld [vmem:[#allocation5 + $0x74] sm:$0xf]
        %v537 = vld [vmem:[#allocation5 + $0x78] sm:$0xf]
        %v538 = vld [vmem:[#allocation5 + $0x7c] sm:$0xf]
        %v571 = vunpack.c.l.b16 %v507
        %v572 = vunpack.c.l.b16 %v508
        %v573 = vunpack.c.l.b16 %v509
        %v574 = vunpack.c.l.b16 %v510
        %v575 = vunpack.c.l.b16 %v511
        %v576 = vunpack.c.l.b16 %v512
        %v577 = vunpack.c.l.b16 %v513
        %v578 = vunpack.c.l.b16 %v514
        %v579 = vunpack.c.l.b16 %v515
        %v580 = vunpack.c.l.b16 %v516
        %v581 = vunpack.c.l.b16 %v517
        %v582 = vunpack.c.l.b16 %v518
        %v583 = vunpack.c.l.b16 %v519
        %v584 = vunpack.c.l.b16 %v520
        %v585 = vunpack.c.l.b16 %v521
        %v586 = vunpack.c.l.b16 %v522
        %v587 = vunpack.c.l.b16 %v523
        %v588 = vunpack.c.l.b16 %v524
        %v589 = vunpack.c.l.b16 %v525
        %v590 = vunpack.c.l.b16 %v526
        %v591 = vunpack.c.l.b16 %v527
        %v592 = vunpack.c.l.b16 %v528
        %v593 = vunpack.c.l.b16 %v529
        %v594 = vunpack.c.l.b16 %v530
        %v595 = vunpack.c.l.b16 %v531
        %v596 = vunpack.c.l.b16 %v532
        %v597 = vunpack.c.l.b16 %v533
        %v598 = vunpack.c.l.b16 %v534
        %v599 = vunpack.c.l.b16 %v535
        %v600 = vunpack.c.l.b16 %v536
        %v601 = vunpack.c.l.b16 %v537
        %v602 = vunpack.c.l.b16 %v538
        %v603 = vpack.c.b16 %v572, %v571
        %v604 = vpack.c.b16 %v574, %v573
        %v605 = vpack.c.b16 %v576, %v575
        %v606 = vpack.c.b16 %v578, %v577
        %v607 = vpack.c.b16 %v580, %v579
        %v608 = vpack.c.b16 %v582, %v581
        %v609 = vpack.c.b16 %v584, %v583
        %v610 = vpack.c.b16 %v586, %v585
        %v611 = vpack.c.b16 %v588, %v587
        %v612 = vpack.c.b16 %v590, %v589
        %v613 = vpack.c.b16 %v592, %v591
        %v614 = vpack.c.b16 %v594, %v593
        %v615 = vpack.c.b16 %v596, %v595
        %v616 = vpack.c.b16 %v598, %v597
        %v617 = vpack.c.b16 %v600, %v599
        %v618 = vpack.c.b16 %v602, %v601
        %635 = vmatprep.subr.bf16.mxu0 0
        %636 = vmatpush1.bf16.msra.mxu0 %v603
        %637 = vmatprep.subr.bf16.mxu0 0
        %638 = vmatpush1.bf16.msra.mxu0 %v604
        %639 = vmatprep.subr.bf16.mxu0 0
        %640 = vmatpush1.bf16.msra.mxu0 %v605
        %641 = vmatprep.subr.bf16.mxu0 0
        %642 = vmatpush1.bf16.msra.mxu0 %v606
        %643 = vmatprep.subr.bf16.mxu0 0
        %644 = vmatpush1.bf16.msra.mxu0 %v607
        %645 = vmatprep.subr.bf16.mxu0 0
        %646 = vmatpush1.bf16.msra.mxu0 %v608
        %647 = vmatprep.subr.bf16.mxu0 0
        %648 = vmatpush1.bf16.msra.mxu0 %v609
        %649 = vmatprep.subr.bf16.mxu0 0
        %650 = vmatpush1.bf16.msra.mxu0 %v610
        %651 = vmatprep.subr.bf16.mxu0 0
        %652 = vmatpush1.bf16.msra.mxu0 %v611
        %653 = vmatprep.subr.bf16.mxu0 0
        %654 = vmatpush1.bf16.msra.mxu0 %v612
        %655 = vmatprep.subr.bf16.mxu0 0
        %656 = vmatpush1.bf16.msra.mxu0 %v613
        %657 = vmatprep.subr.bf16.mxu0 0
        %658 = vmatpush1.bf16.msra.mxu0 %v614
        %659 = vmatprep.subr.bf16.mxu0 0
        %660 = vmatpush1.bf16.msra.mxu0 %v615
        %661 = vmatprep.subr.bf16.mxu0 0
        %662 = vmatpush1.bf16.msra.mxu0 %v616
        %663 = vmatprep.subr.bf16.mxu0 0
        %664 = vmatpush1.bf16.msra.mxu0 %v617
        %665 = vmatprep.subr.bf16.mxu0 0
        %666 = vmatpush1.bf16.msra.mxu0 %v618
        %667 = vmatprep.mubr.bf16.mxu0 %v484
        %668 = vmatmul.mubr.bf16.gmra.mrb[0].mxu0 %v483
        %v669 = vpop.f32.mrb[0].mxu0
        %v670 = vadd.f32 0.0, %v669
        %v671 = vpop.f32.mrb[0].mxu0
        %v672 = vpop.f32.mrb[0].mxu0
        %v673 = vadd.f32 0.0, %v672
        %v674 = vpop.f32.mrb[0].mxu0
        %675 = vmatprep.mubr.bf16.mxu0 %v486
        %676 = vmatmul.mubr.bf16.gmra.mrb[0].mxu0 %v485
        %v677 = vpop.f32.mrb[0].mxu0
        %v678 = vadd.f32 0.0, %v677
        %v679 = vpop.f32.mrb[0].mxu0
        %v680 = vpop.f32.mrb[0].mxu0
        %v681 = vadd.f32 0.0, %v680
        %v682 = vpop.f32.mrb[0].mxu0
        %683 = vmatprep.mubr.bf16.mxu0 %v488
        %684 = vmatmul.mubr.bf16.gmra.mrb[0].mxu0 %v487
        %v685 = vpop.f32.mrb[0].mxu0
        %v686 = vadd.f32 0.0, %v685
        %v687 = vpop.f32.mrb[0].mxu0
        %v688 = vpop.f32.mrb[0].mxu0
        %v689 = vadd.f32 0.0, %v688
        %v690 = vpop.f32.mrb[0].mxu0
        %691 = vmatprep.mubr.bf16.mxu0 %v490
        %692 = vmatmul.mubr.bf16.gmra.mrb[0].mxu0 %v489
        %v693 = vpop.f32.mrb[0].mxu0
        %v694 = vadd.f32 0.0, %v693
        %v695 = vpop.f32.mrb[0].mxu0
        %v696 = vpop.f32.mrb[0].mxu0
        %v697 = vadd.f32 0.0, %v696
        %v698 = vpop.f32.mrb[0].mxu0
        %699 = vdwg.mxu0
        %v700 = vld [vmem:[%s4] sm:$0x1]
        %v701 = vld [vmem:[%s5] sm:$0x1]
        %702 = vmatprep.subr.mxu0 0.0
        %703 = vmatpush1.msra.mxu0 %v491
        %704 = vmatprep.subr.mxu0 0.0
        %705 = vmatpush1.msra.mxu0 %v492
        %706 = vmatprep.subr.mxu0 0.0
        %707 = vmatpush1.msra.mxu0 %v493
        %708 = vmatprep.subr.mxu0 0.0
        %709 = vmatpush1.msra.mxu0 %v494
        %710 = vmatprep.subr.mxu0 0.0
        %711 = vmatpush1.msra.mxu0 %v495
        %712 = vmatprep.subr.mxu0 0.0
        %713 = vmatpush1.msra.mxu0 %v496
        %714 = vmatprep.subr.mxu0 0.0
        %715 = vmatpush1.msra.mxu0 %v497
        %716 = vmatprep.subr.mxu0 0.0
        %717 = vmatpush1.msra.mxu0 %v498
        %718 = vmatprep.subr.mxu0 0.0
        %719 = vmatpush1.msra.mxu0 %v499
        %720 = vmatprep.subr.mxu0 0.0
        %721 = vmatpush1.msra.mxu0 %v500
        %722 = vmatprep.subr.mxu0 0.0
        %723 = vmatpush1.msra.mxu0 %v501
        %724 = vmatprep.subr.mxu0 0.0
        %725 = vmatpush1.msra.mxu0 %v502
        %726 = vmatprep.subr.mxu0 0.0
        %727 = vmatpush1.msra.mxu0 %v503
        %728 = vmatprep.subr.mxu0 0.0
        %729 = vmatpush1.msra.mxu0 %v504
        %730 = vmatprep.subr.mxu0 0.0
        %731 = vmatpush1.msra.mxu0 %v505
        %732 = vmatprep.subr.mxu0 0.0
        %733 = vmatpush1.msra.mxu0 %v506
        %734 = vmatprep.subr.mxu0 0.0
        %735 = vmatpush1.msra.mxu0 0.0
        %736 = vmatprep.subr.mxu0 0.0
        %737 = vmatpush1.msra.mxu0 0.0
        %738 = vmatprep.subr.mxu0 0.0
        %739 = vmatpush1.msra.mxu0 0.0
        %740 = vmatprep.subr.mxu0 0.0
        %741 = vmatpush1.msra.mxu0 0.0
        %742 = vmatprep.subr.mxu0 0.0
        %743 = vmatpush1.msra.mxu0 0.0
        %744 = vmatprep.subr.mxu0 0.0
        %745 = vmatpush1.msra.mxu0 0.0
        %746 = vmatprep.subr.mxu0 0.0
        %747 = vmatpush1.msra.mxu0 0.0
        %748 = vmatprep.subr.mxu0 0.0
        %749 = vmatpush1.msra.mxu0 0.0
        %750 = vmatprep.subr.mxu0 0.0
        %751 = vmatpush1.msra.mxu0 0.0
        %752 = vmatprep.subr.mxu0 0.0
        %753 = vmatpush1.msra.mxu0 0.0
        %754 = vmatprep.subr.mxu0 0.0
        %755 = vmatpush1.msra.mxu0 0.0
        %756 = vmatprep.subr.mxu0 0.0
        %757 = vmatpush1.msra.mxu0 0.0
        %758 = vmatprep.subr.mxu0 0.0
        %759 = vmatpush1.msra.mxu0 0.0
        %760 = vmatprep.subr.mxu0 0.0
        %761 = vmatpush1.msra.mxu0 0.0
        %762 = vmatprep.subr.mxu0 0.0
        %763 = vmatpush1.msra.mxu0 0.0
        %764 = vmatprep.subr.mxu0 0.0
        %765 = vmatpush1.msra.mxu0 0.0
        %766 = vmatprep.mubr.f32.mxu0 0.0
        %767 = vmatmul.mubr.f32.gmra.mrb[0].mxu0 %v670
        %v768 = vpop.f32.mrb[0].mxu0
        %v769 = vadd.f32 0.0, %v768
        %v770 = vpop.f32.mrb[0].mxu0
        %771 = vmatprep.mubr.f32.mxu0 0.0
        %772 = vmatmul.mubr.f32.gmra.mrb[0].mxu0 %v673
        %v773 = vpop.f32.mrb[0].mxu0
        %v774 = vadd.f32 0.0, %v773
        %v775 = vpop.f32.mrb[0].mxu0
        %776 = vmatprep.mubr.f32.mxu0 0.0
        %777 = vmatmul.mubr.f32.gmra.mrb[0].mxu0 %v678
        %v778 = vpop.f32.mrb[0].mxu0
        %v779 = vadd.f32 0.0, %v778
        %v780 = vpop.f32.mrb[0].mxu0
        %781 = vmatprep.mubr.f32.mxu0 0.0
        %782 = vmatmul.mubr.f32.gmra.mrb[0].mxu0 %v681
        %v783 = vpop.f32.mrb[0].mxu0
        %v784 = vadd.f32 0.0, %v783
        %v785 = vpop.f32.mrb[0].mxu0
        %786 = vmatprep.mubr.f32.mxu0 0.0
        %787 = vmatmul.mubr.f32.gmra.mrb[0].mxu0 %v686
        %v788 = vpop.f32.mrb[0].mxu0
        %v789 = vadd.f32 0.0, %v788
        %v790 = vpop.f32.mrb[0].mxu0
        %791 = vmatprep.mubr.f32.mxu0 0.0
        %792 = vmatmul.mubr.f32.gmra.mrb[0].mxu0 %v689
        %v793 = vpop.f32.mrb[0].mxu0
        %v794 = vadd.f32 0.0, %v793
        %v795 = vpop.f32.mrb[0].mxu0
        %796 = vmatprep.mubr.f32.mxu0 0.0
        %797 = vmatmul.mubr.f32.gmra.mrb[0].mxu0 %v694
        %v798 = vpop.f32.mrb[0].mxu0
        %v799 = vadd.f32 0.0, %v798
        %v800 = vpop.f32.mrb[0].mxu0
        %801 = vmatprep.mubr.f32.mxu0 0.0
        %802 = vmatmul.mubr.f32.gmra.mrb[0].mxu0 %v697
        %v803 = vpop.f32.mrb[0].mxu0
        %v804 = vadd.f32 0.0, %v803
        %v805 = vpop.f32.mrb[0].mxu0
        %806 = vdwg.mxu0
        %v807 = vsub.f32 %v670, %v769
        %v808 = vsub.f32 %v673, %v774
        %v809 = vsub.f32 %v678, %v779
        %v810 = vsub.f32 %v681, %v784
        %v811 = vsub.f32 %v686, %v789
        %v812 = vsub.f32 %v689, %v794
        %v813 = vsub.f32 %v694, %v799
        %v814 = vsub.f32 %v697, %v804
        %v815 = vmul.f32 %v807, %v807
        %v816 = vmul.f32 %v808, %v808
        %v817 = vmul.f32 %v809, %v809
        %v818 = vmul.f32 %v810, %v810
        %v819 = vmul.f32 %v811, %v811
        %v820 = vmul.f32 %v812, %v812
        %v821 = vmul.f32 %v813, %v813
        %v822 = vmul.f32 %v814, %v814
        %823 = vmatprep.subr.mxu0 0.0
        %824 = vmatpush1.msra.mxu0 %v491
        %825 = vmatprep.subr.mxu0 0.0
        %826 = vmatpush1.msra.mxu0 %v492
        %827 = vmatprep.subr.mxu0 0.0
        %828 = vmatpush1.msra.mxu0 %v493
        %829 = vmatprep.subr.mxu0 0.0
        %830 = vmatpush1.msra.mxu0 %v494
        %831 = vmatprep.subr.mxu0 0.0
        %832 = vmatpush1.msra.mxu0 %v495
        %833 = vmatprep.subr.mxu0 0.0
        %834 = vmatpush1.msra.mxu0 %v496
        %835 = vmatprep.subr.mxu0 0.0
        %836 = vmatpush1.msra.mxu0 %v497
        %837 = vmatprep.subr.mxu0 0.0
        %838 = vmatpush1.msra.mxu0 %v498
        %839 = vmatprep.subr.mxu0 0.0
        %840 = vmatpush1.msra.mxu0 %v499
        %841 = vmatprep.subr.mxu0 0.0
        %842 = vmatpush1.msra.mxu0 %v500
        %843 = vmatprep.subr.mxu0 0.0
        %844 = vmatpush1.msra.mxu0 %v501
        %845 = vmatprep.subr.mxu0 0.0
        %846 = vmatpush1.msra.mxu0 %v502
        %847 = vmatprep.subr.mxu0 0.0
        %848 = vmatpush1.msra.mxu0 %v503
        %849 = vmatprep.subr.mxu0 0.0
        %850 = vmatpush1.msra.mxu0 %v504
        %851 = vmatprep.subr.mxu0 0.0
        %852 = vmatpush1.msra.mxu0 %v505
        %853 = vmatprep.subr.mxu0 0.0
        %854 = vmatpush1.msra.mxu0 %v506
        %855 = vmatprep.subr.mxu0 0.0
        %856 = vmatpush1.msra.mxu0 0.0
        %857 = vmatprep.subr.mxu0 0.0
        %858 = vmatpush1.msra.mxu0 0.0
        %859 = vmatprep.subr.mxu0 0.0
        %860 = vmatpush1.msra.mxu0 0.0
        %861 = vmatprep.subr.mxu0 0.0
        %862 = vmatpush1.msra.mxu0 0.0
        %863 = vmatprep.subr.mxu0 0.0
        %864 = vmatpush1.msra.mxu0 0.0
        %865 = vmatprep.subr.mxu0 0.0
        %866 = vmatpush1.msra.mxu0 0.0
        %867 = vmatprep.subr.mxu0 0.0
        %868 = vmatpush1.msra.mxu0 0.0
        %869 = vmatprep.subr.mxu0 0.0
        %870 = vmatpush1.msra.mxu0 0.0
        %871 = vmatprep.subr.mxu0 0.0
        %872 = vmatpush1.msra.mxu0 0.0
        %873 = vmatprep.subr.mxu0 0.0
        %874 = vmatpush1.msra.mxu0 0.0
        %875 = vmatprep.subr.mxu0 0.0
        %876 = vmatpush1.msra.mxu0 0.0
        %877 = vmatprep.subr.mxu0 0.0
        %878 = vmatpush1.msra.mxu0 0.0
        %879 = vmatprep.subr.mxu0 0.0
        %880 = vmatpush1.msra.mxu0 0.0
        %881 = vmatprep.subr.mxu0 0.0
        %882 = vmatpush1.msra.mxu0 0.0
        %883 = vmatprep.subr.mxu0 0.0
        %884 = vmatpush1.msra.mxu0 0.0
        %885 = vmatprep.subr.mxu0 0.0
        %886 = vmatpush1.msra.mxu0 0.0
        %887 = vmatprep.mubr.f32.mxu0 0.0
        %888 = vmatmul.mubr.f32.gmra.mrb[0].mxu0 %v815
        %v889 = vpop.f32.mrb[0].mxu0
        %v890 = vadd.f32 1e-05, %v889
        %v891 = vpop.f32.mrb[0].mxu0
        %892 = vmatprep.mubr.f32.mxu0 0.0
        %893 = vmatmul.mubr.f32.gmra.mrb[0].mxu0 %v816
        %v894 = vpop.f32.mrb[0].mxu0
        %v895 = vadd.f32 1e-05, %v894
        %v896 = vpop.f32.mrb[0].mxu0
        %897 = vmatprep.mubr.f32.mxu0 0.0
        %898 = vmatmul.mubr.f32.gmra.mrb[0].mxu0 %v817
        %v899 = vpop.f32.mrb[0].mxu0
        %v900 = vadd.f32 1e-05, %v899
        %v901 = vpop.f32.mrb[0].mxu0
        %902 = vmatprep.mubr.f32.mxu0 0.0
        %903 = vmatmul.mubr.f32.gmra.mrb[0].mxu0 %v818
        %v904 = vpop.f32.mrb[0].mxu0
        %v905 = vadd.f32 1e-05, %v904
        %v906 = vpop.f32.mrb[0].mxu0
        %907 = vmatprep.mubr.f32.mxu0 0.0
        %908 = vmatmul.mubr.f32.gmra.mrb[0].mxu0 %v819
        %v909 = vpop.f32.mrb[0].mxu0
        %v910 = vadd.f32 1e-05, %v909
        %v911 = vpop.f32.mrb[0].mxu0
        %912 = vmatprep.mubr.f32.mxu0 0.0
        %913 = vmatmul.mubr.f32.gmra.mrb[0].mxu0 %v820
        %v914 = vpop.f32.mrb[0].mxu0
        %v915 = vadd.f32 1e-05, %v914
        %v916 = vpop.f32.mrb[0].mxu0
        %917 = vmatprep.mubr.f32.mxu0 0.0
        %918 = vmatmul.mubr.f32.gmra.mrb[0].mxu0 %v821
        %v919 = vpop.f32.mrb[0].mxu0
        %v920 = vadd.f32 1e-05, %v919
        %v921 = vpop.f32.mrb[0].mxu0
        %922 = vmatprep.mubr.f32.mxu0 0.0
        %923 = vmatmul.mubr.f32.gmra.mrb[0].mxu0 %v822
        %v924 = vpop.f32.mrb[0].mxu0
        %v925 = vadd.f32 1e-05, %v924
        %v926 = vpop.f32.mrb[0].mxu0
        %927 = vdwg.mxu0
        %v928 = vrsqrt.pop %v890
        %v929 = vrsqrt.pop %v895
        %v930 = vrsqrt.pop %v900
        %v931 = vrsqrt.pop %v905
        %v932 = vrsqrt.pop %v910
        %v933 = vrsqrt.pop %v915
        %v934 = vrsqrt.pop %v920
        %v935 = vrsqrt.pop %v925
        %v936 = vmul.f32 %v807, %v928
        %v937 = vmul.f32 %v808, %v929
        %v938 = vmul.f32 %v809, %v930
        %v939 = vmul.f32 %v810, %v931
        %v940 = vmul.f32 %v811, %v932
        %v941 = vmul.f32 %v812, %v933
        %v942 = vmul.f32 %v813, %v934
        %v943 = vmul.f32 %v814, %v935
        %v945 = vlaneseq
        %v946 = vshrl.u32 %v945, 7
        %v947 = vsub.s32 0, %v946
        %v948 = vrot.slane %v700, %v947
        %v950 = vmul.f32 %v936, %v948
        %v951 = vmul.f32 %v937, %v948
        %v952 = vmul.f32 %v938, %v948
        %v953 = vmul.f32 %v939, %v948
        %v954 = vmul.f32 %v940, %v948
        %v955 = vmul.f32 %v941, %v948
        %v956 = vmul.f32 %v942, %v948
        %v957 = vmul.f32 %v943, %v948
        %v959 = vlaneseq
        %v960 = vshrl.u32 %v959, 7
        %v961 = vsub.s32 0, %v960
        %v962 = vrot.slane %v701, %v961
        %v964 = vadd.f32 %v950, %v962
        %v965 = vadd.f32 %v951, %v962
        %v966 = vadd.f32 %v952, %v962
        %v967 = vadd.f32 %v953, %v962
        %v968 = vadd.f32 %v954, %v962
        %v969 = vadd.f32 %v955, %v962
        %v970 = vadd.f32 %v956, %v962
        %v971 = vadd.f32 %v957, %v962
        %v972 = vmax.f32 %v964, 0.0
        %v973 = vmax.f32 %v965, 0.0
        %v974 = vmax.f32 %v966, 0.0
        %v975 = vmax.f32 %v967, 0.0
        %v976 = vmax.f32 %v968, 0.0
        %v977 = vmax.f32 %v969, 0.0
        %v978 = vmax.f32 %v970, 0.0
        %v979 = vmax.f32 %v971, 0.0
        %v980 = vpack.c.bf16 %v973, %v972
        %v981 = vpack.c.bf16 %v975, %v974
        %v982 = vpack.c.bf16 %v977, %v976
        %v983 = vpack.c.bf16 %v979, %v978
        %v984 = vld [vmem:[#allocation7] sm:$0xf]
        %v985 = vld [vmem:[#allocation7 + $0x4] sm:$0xf]
        %v986 = vld [vmem:[#allocation7 + $0x8] sm:$0xf]
        %v987 = vld [vmem:[#allocation7 + $0xc] sm:$0xf]
        %v988 = vld [vmem:[#allocation7 + $0x10] sm:$0xf]
        %v989 = vld [vmem:[#allocation7 + $0x14] sm:$0xf]
        %v990 = vld [vmem:[#allocation7 + $0x18] sm:$0xf]
        %v991 = vld [vmem:[#allocation7 + $0x1c] sm:$0xf]
        %v992 = vld [vmem:[#allocation7 + $0x20] sm:$0xf]
        %v993 = vld [vmem:[#allocation7 + $0x24] sm:$0xf]
        %v994 = vld [vmem:[#allocation7 + $0x28] sm:$0xf]
        %v995 = vld [vmem:[#allocation7 + $0x2c] sm:$0xf]
        %v996 = vld [vmem:[#allocation7 + $0x30] sm:$0xf]
        %v997 = vld [vmem:[#allocation7 + $0x34] sm:$0xf]
        %v998 = vld [vmem:[#allocation7 + $0x38] sm:$0xf]
        %v999 = vld [vmem:[#allocation7 + $0x3c] sm:$0xf]
        %v1016 = vunpack.c.l.b16 %v984
        %v1017 = vunpack.c.l.b16 %v985
        %v1018 = vunpack.c.l.b16 %v986
        %v1019 = vunpack.c.l.b16 %v987
        %v1020 = vunpack.c.l.b16 %v988
        %v1021 = vunpack.c.l.b16 %v989
        %v1022 = vunpack.c.l.b16 %v990
        %v1023 = vunpack.c.l.b16 %v991
        %v1024 = vunpack.c.l.b16 %v992
        %v1025 = vunpack.c.l.b16 %v993
        %v1026 = vunpack.c.l.b16 %v994
        %v1027 = vunpack.c.l.b16 %v995
        %v1028 = vunpack.c.l.b16 %v996
        %v1029 = vunpack.c.l.b16 %v997
        %v1030 = vunpack.c.l.b16 %v998
        %v1031 = vunpack.c.l.b16 %v999
        %v1032 = vpack.c.b16 %v1017, %v1016
        %v1033 = vpack.c.b16 %v1019, %v1018
        %v1034 = vpack.c.b16 %v1021, %v1020
        %v1035 = vpack.c.b16 %v1023, %v1022
        %v1036 = vpack.c.b16 %v1025, %v1024
        %v1037 = vpack.c.b16 %v1027, %v1026
        %v1038 = vpack.c.b16 %v1029, %v1028
        %v1039 = vpack.c.b16 %v1031, %v1030
        %1048 = vmatprep.subr.bf16.mxu0 0
        %1049 = vmatpush1.bf16.msra.mxu0 %v1032
        %1050 = vmatprep.subr.bf16.mxu0 0
        %1051 = vmatpush1.bf16.msra.mxu0 %v1033
        %1052 = vmatprep.subr.bf16.mxu0 0
        %1053 = vmatpush1.bf16.msra.mxu0 %v1034
        %1054 = vmatprep.subr.bf16.mxu0 0
        %1055 = vmatpush1.bf16.msra.mxu0 %v1035
        %1056 = vmatprep.subr.bf16.mxu0 0
        %1057 = vmatpush1.bf16.msra.mxu0 %v1036
        %1058 = vmatprep.subr.bf16.mxu0 0
        %1059 = vmatpush1.bf16.msra.mxu0 %v1037
        %1060 = vmatprep.subr.bf16.mxu0 0
        %1061 = vmatpush1.bf16.msra.mxu0 %v1038
        %1062 = vmatprep.subr.bf16.mxu0 0
        %1063 = vmatpush1.bf16.msra.mxu0 %v1039
        %1064 = vmatprep.subr.bf16.mxu0 0
        %1065 = vmatpush1.bf16.msra.mxu0 0
        %1066 = vmatprep.subr.bf16.mxu0 0
        %1067 = vmatpush1.bf16.msra.mxu0 0
        %1068 = vmatprep.subr.bf16.mxu0 0
        %1069 = vmatpush1.bf16.msra.mxu0 0
        %1070 = vmatprep.subr.bf16.mxu0 0
        %1071 = vmatpush1.bf16.msra.mxu0 0
        %1072 = vmatprep.subr.bf16.mxu0 0
        %1073 = vmatpush1.bf16.msra.mxu0 0
        %1074 = vmatprep.subr.bf16.mxu0 0
        %1075 = vmatpush1.bf16.msra.mxu0 0
        %1076 = vmatprep.subr.bf16.mxu0 0
        %1077 = vmatpush1.bf16.msra.mxu0 0
        %1078 = vmatprep.subr.bf16.mxu0 0
        %1079 = vmatpush1.bf16.msra.mxu0 0
        %1080 = vmatprep.mubr.bf16.mxu0 0
        %1081 = vmatmul.mubr.bf16.gmra.mrb[0].mxu0 %v980
        %v1082 = vpop.f32.mrb[0].mxu0
        %v1083 = vadd.f32 0.0, %v1082
        %v1084 = vpop.f32.mrb[0].mxu0
        %v1085 = vpop.f32.mrb[0].mxu0
        %v1086 = vadd.f32 0.0, %v1085
        %v1087 = vpop.f32.mrb[0].mxu0
        %1088 = vmatprep.mubr.bf16.mxu0 0
        %1089 = vmatmul.mubr.bf16.gmra.mrb[0].mxu0 %v981
        %v1090 = vpop.f32.mrb[0].mxu0
        %v1091 = vadd.f32 0.0, %v1090
        %v1092 = vpop.f32.mrb[0].mxu0
        %v1093 = vpop.f32.mrb[0].mxu0
        %v1094 = vadd.f32 0.0, %v1093
        %v1095 = vpop.f32.mrb[0].mxu0
        %1096 = vmatprep.mubr.bf16.mxu0 0
        %1097 = vmatmul.mubr.bf16.gmra.mrb[0].mxu0 %v982
        %v1098 = vpop.f32.mrb[0].mxu0
        %v1099 = vadd.f32 0.0, %v1098
        %v1100 = vpop.f32.mrb[0].mxu0
        %v1101 = vpop.f32.mrb[0].mxu0
        %v1102 = vadd.f32 0.0, %v1101
        %v1103 = vpop.f32.mrb[0].mxu0
        %1104 = vmatprep.mubr.bf16.mxu0 0
        %1105 = vmatmul.mubr.bf16.gmra.mrb[0].mxu0 %v983
        %v1106 = vpop.f32.mrb[0].mxu0
        %v1107 = vadd.f32 0.0, %v1106
        %v1108 = vpop.f32.mrb[0].mxu0
        %v1109 = vpop.f32.mrb[0].mxu0
        %v1110 = vadd.f32 0.0, %v1109
        %v1111 = vpop.f32.mrb[0].mxu0
        %1112 = vdwg.mxu0
        %v1113 = vld [vmem:[%s6] sm:$0x1]
        %v1114 = vld [vmem:[%s7] sm:$0x1]
        %1115 = vmatprep.subr.mxu0 0.0
        %1116 = vmatpush1.msra.mxu0 %v491
        %1117 = vmatprep.subr.mxu0 0.0
        %1118 = vmatpush1.msra.mxu0 %v492
        %1119 = vmatprep.subr.mxu0 0.0
        %1120 = vmatpush1.msra.mxu0 %v493
        %1121 = vmatprep.subr.mxu0 0.0
        %1122 = vmatpush1.msra.mxu0 %v494
        %1123 = vmatprep.subr.mxu0 0.0
        %1124 = vmatpush1.msra.mxu0 %v495
        %1125 = vmatprep.subr.mxu0 0.0
        %1126 = vmatpush1.msra.mxu0 %v496
        %1127 = vmatprep.subr.mxu0 0.0
        %1128 = vmatpush1.msra.mxu0 %v497
        %1129 = vmatprep.subr.mxu0 0.0
        %1130 = vmatpush1.msra.mxu0 %v498
        %1131 = vmatprep.subr.mxu0 0.0
        %1132 = vmatpush1.msra.mxu0 %v499
        %1133 = vmatprep.subr.mxu0 0.0
        %1134 = vmatpush1.msra.mxu0 %v500
        %1135 = vmatprep.subr.mxu0 0.0
        %1136 = vmatpush1.msra.mxu0 %v501
        %1137 = vmatprep.subr.mxu0 0.0
        %1138 = vmatpush1.msra.mxu0 %v502
        %1139 = vmatprep.subr.mxu0 0.0
        %1140 = vmatpush1.msra.mxu0 %v503
        %1141 = vmatprep.subr.mxu0 0.0
        %1142 = vmatpush1.msra.mxu0 %v504
        %1143 = vmatprep.subr.mxu0 0.0
        %1144 = vmatpush1.msra.mxu0 %v505
        %1145 = vmatprep.subr.mxu0 0.0
        %1146 = vmatpush1.msra.mxu0 %v506
        %1147 = vmatprep.subr.mxu0 0.0
        %1148 = vmatpush1.msra.mxu0 0.0
        %1149 = vmatprep.subr.mxu0 0.0
        %1150 = vmatpush1.msra.mxu0 0.0
        %1151 = vmatprep.subr.mxu0 0.0
        %1152 = vmatpush1.msra.mxu0 0.0
        %1153 = vmatprep.subr.mxu0 0.0
        %1154 = vmatpush1.msra.mxu0 0.0
        %1155 = vmatprep.subr.mxu0 0.0
        %1156 = vmatpush1.msra.mxu0 0.0
        %1157 = vmatprep.subr.mxu0 0.0
        %1158 = vmatpush1.msra.mxu0 0.0
        %1159 = vmatprep.subr.mxu0 0.0
        %1160 = vmatpush1.msra.mxu0 0.0
        %1161 = vmatprep.subr.mxu0 0.0
        %1162 = vmatpush1.msra.mxu0 0.0
        %1163 = vmatprep.subr.mxu0 0.0
        %1164 = vmatpush1.msra.mxu0 0.0
        %1165 = vmatprep.subr.mxu0 0.0
        %1166 = vmatpush1.msra.mxu0 0.0
        %1167 = vmatprep.subr.mxu0 0.0
        %1168 = vmatpush1.msra.mxu0 0.0
        %1169 = vmatprep.subr.mxu0 0.0
        %1170 = vmatpush1.msra.mxu0 0.0
        %1171 = vmatprep.subr.mxu0 0.0
        %1172 = vmatpush1.msra.mxu0 0.0
        %1173 = vmatprep.subr.mxu0 0.0
        %1174 = vmatpush1.msra.mxu0 0.0
        %1175 = vmatprep.subr.mxu0 0.0
        %1176 = vmatpush1.msra.mxu0 0.0
        %1177 = vmatprep.subr.mxu0 0.0
        %1178 = vmatpush1.msra.mxu0 0.0
        %1179 = vmatprep.mubr.f32.mxu0 0.0
        %1180 = vmatmul.mubr.f32.gmra.mrb[0].mxu0 %v1083
        %v1181 = vpop.f32.mrb[0].mxu0
        %v1182 = vadd.f32 0.0, %v1181
        %v1183 = vpop.f32.mrb[0].mxu0
        %1184 = vmatprep.mubr.f32.mxu0 0.0
        %1185 = vmatmul.mubr.f32.gmra.mrb[0].mxu0 %v1086
        %v1186 = vpop.f32.mrb[0].mxu0
        %v1187 = vadd.f32 0.0, %v1186
        %v1188 = vpop.f32.mrb[0].mxu0
        %1189 = vmatprep.mubr.f32.mxu0 0.0
        %1190 = vmatmul.mubr.f32.gmra.mrb[0].mxu0 %v1091
        %v1191 = vpop.f32.mrb[0].mxu0
        %v1192 = vadd.f32 0.0, %v1191
        %v1193 = vpop.f32.mrb[0].mxu0
        %1194 = vmatprep.mubr.f32.mxu0 0.0
        %1195 = vmatmul.mubr.f32.gmra.mrb[0].mxu0 %v1094
        %v1196 = vpop.f32.mrb[0].mxu0
        %v1197 = vadd.f32 0.0, %v1196
        %v1198 = vpop.f32.mrb[0].mxu0
        %1199 = vmatprep.mubr.f32.mxu0 0.0
        %1200 = vmatmul.mubr.f32.gmra.mrb[0].mxu0 %v1099
        %v1201 = vpop.f32.mrb[0].mxu0
        %v1202 = vadd.f32 0.0, %v1201
        %v1203 = vpop.f32.mrb[0].mxu0
        %1204 = vmatprep.mubr.f32.mxu0 0.0
        %1205 = vmatmul.mubr.f32.gmra.mrb[0].mxu0 %v1102
        %v1206 = vpop.f32.mrb[0].mxu0
        %v1207 = vadd.f32 0.0, %v1206
        %v1208 = vpop.f32.mrb[0].mxu0
        %1209 = vmatprep.mubr.f32.mxu0 0.0
        %1210 = vmatmul.mubr.f32.gmra.mrb[0].mxu0 %v1107
        %v1211 = vpop.f32.mrb[0].mxu0
        %v1212 = vadd.f32 0.0, %v1211
        %v1213 = vpop.f32.mrb[0].mxu0
        %1214 = vmatprep.mubr.f32.mxu0 0.0
        %1215 = vmatmul.mubr.f32.gmra.mrb[0].mxu0 %v1110
        %v1216 = vpop.f32.mrb[0].mxu0
        %v1217 = vadd.f32 0.0, %v1216
        %v1218 = vpop.f32.mrb[0].mxu0
        %1219 = vdwg.mxu0
        %v1220 = vsub.f32 %v1083, %v1182
        %v1221 = vsub.f32 %v1086, %v1187
        %v1222 = vsub.f32 %v1091, %v1192
        %v1223 = vsub.f32 %v1094, %v1197
        %v1224 = vsub.f32 %v1099, %v1202
        %v1225 = vsub.f32 %v1102, %v1207
        %v1226 = vsub.f32 %v1107, %v1212
        %v1227 = vsub.f32 %v1110, %v1217
        %v1228 = vmul.f32 %v1220, %v1220
        %v1229 = vmul.f32 %v1221, %v1221
        %v1230 = vmul.f32 %v1222, %v1222
        %v1231 = vmul.f32 %v1223, %v1223
        %v1232 = vmul.f32 %v1224, %v1224
        %v1233 = vmul.f32 %v1225, %v1225
        %v1234 = vmul.f32 %v1226, %v1226
        %v1235 = vmul.f32 %v1227, %v1227
        %1236 = vmatprep.subr.mxu0 0.0
        %1237 = vmatpush1.msra.mxu0 %v491
        %1238 = vmatprep.subr.mxu0 0.0
        %1239 = vmatpush1.msra.mxu0 %v492
        %1240 = vmatprep.subr.mxu0 0.0
        %1241 = vmatpush1.msra.mxu0 %v493
        %1242 = vmatprep.subr.mxu0 0.0
        %1243 = vmatpush1.msra.mxu0 %v494
        %1244 = vmatprep.subr.mxu0 0.0
        %1245 = vmatpush1.msra.mxu0 %v495
        %1246 = vmatprep.subr.mxu0 0.0
        %1247 = vmatpush1.msra.mxu0 %v496
        %1248 = vmatprep.subr.mxu0 0.0
        %1249 = vmatpush1.msra.mxu0 %v497
        %1250 = vmatprep.subr.mxu0 0.0
        %1251 = vmatpush1.msra.mxu0 %v498
        %1252 = vmatprep.subr.mxu0 0.0
        %1253 = vmatpush1.msra.mxu0 %v499
        %1254 = vmatprep.subr.mxu0 0.0
        %1255 = vmatpush1.msra.mxu0 %v500
        %1256 = vmatprep.subr.mxu0 0.0
        %1257 = vmatpush1.msra.mxu0 %v501
        %1258 = vmatprep.subr.mxu0 0.0
        %1259 = vmatpush1.msra.mxu0 %v502
        %1260 = vmatprep.subr.mxu0 0.0
        %1261 = vmatpush1.msra.mxu0 %v503
        %1262 = vmatprep.subr.mxu0 0.0
        %1263 = vmatpush1.msra.mxu0 %v504
        %1264 = vmatprep.subr.mxu0 0.0
        %1265 = vmatpush1.msra.mxu0 %v505
        %1266 = vmatprep.subr.mxu0 0.0
        %1267 = vmatpush1.msra.mxu0 %v506
        %1268 = vmatprep.subr.mxu0 0.0
        %1269 = vmatpush1.msra.mxu0 0.0
        %1270 = vmatprep.subr.mxu0 0.0
        %1271 = vmatpush1.msra.mxu0 0.0
        %1272 = vmatprep.subr.mxu0 0.0
        %1273 = vmatpush1.msra.mxu0 0.0
        %1274 = vmatprep.subr.mxu0 0.0
        %1275 = vmatpush1.msra.mxu0 0.0
        %1276 = vmatprep.subr.mxu0 0.0
        %1277 = vmatpush1.msra.mxu0 0.0
        %1278 = vmatprep.subr.mxu0 0.0
        %1279 = vmatpush1.msra.mxu0 0.0
        %1280 = vmatprep.subr.mxu0 0.0
        %1281 = vmatpush1.msra.mxu0 0.0
        %1282 = vmatprep.subr.mxu0 0.0
        %1283 = vmatpush1.msra.mxu0 0.0
        %1284 = vmatprep.subr.mxu0 0.0
        %1285 = vmatpush1.msra.mxu0 0.0
        %1286 = vmatprep.subr.mxu0 0.0
        %1287 = vmatpush1.msra.mxu0 0.0
        %1288 = vmatprep.subr.mxu0 0.0
        %1289 = vmatpush1.msra.mxu0 0.0
        %1290 = vmatprep.subr.mxu0 0.0
        %1291 = vmatpush1.msra.mxu0 0.0
        %1292 = vmatprep.subr.mxu0 0.0
        %1293 = vmatpush1.msra.mxu0 0.0
        %1294 = vmatprep.subr.mxu0 0.0
        %1295 = vmatpush1.msra.mxu0 0.0
        %1296 = vmatprep.subr.mxu0 0.0
        %1297 = vmatpush1.msra.mxu0 0.0
        %1298 = vmatprep.subr.mxu0 0.0
        %1299 = vmatpush1.msra.mxu0 0.0
        %1300 = vmatprep.mubr.f32.mxu0 0.0
        %1301 = vmatmul.mubr.f32.gmra.mrb[0].mxu0 %v1228
        %v1302 = vpop.f32.mrb[0].mxu0
        %v1303 = vadd.f32 1e-05, %v1302
        %v1304 = vpop.f32.mrb[0].mxu0
        %1305 = vmatprep.mubr.f32.mxu0 0.0
        %1306 = vmatmul.mubr.f32.gmra.mrb[0].mxu0 %v1229
        %v1307 = vpop.f32.mrb[0].mxu0
        %v1308 = vadd.f32 1e-05, %v1307
        %v1309 = vpop.f32.mrb[0].mxu0
        %1310 = vmatprep.mubr.f32.mxu0 0.0
        %1311 = vmatmul.mubr.f32.gmra.mrb[0].mxu0 %v1230
        %v1312 = vpop.f32.mrb[0].mxu0
        %v1313 = vadd.f32 1e-05, %v1312
        %v1314 = vpop.f32.mrb[0].mxu0
        %1315 = vmatprep.mubr.f32.mxu0 0.0
        %1316 = vmatmul.mubr.f32.gmra.mrb[0].mxu0 %v1231
        %v1317 = vpop.f32.mrb[0].mxu0
        %v1318 = vadd.f32 1e-05, %v1317
        %v1319 = vpop.f32.mrb[0].mxu0
        %1320 = vmatprep.mubr.f32.mxu0 0.0
        %1321 = vmatmul.mubr.f32.gmra.mrb[0].mxu0 %v1232
        %v1322 = vpop.f32.mrb[0].mxu0
        %v1323 = vadd.f32 1e-05, %v1322
        %v1324 = vpop.f32.mrb[0].mxu0
        %1325 = vmatprep.mubr.f32.mxu0 0.0
        %1326 = vmatmul.mubr.f32.gmra.mrb[0].mxu0 %v1233
        %v1327 = vpop.f32.mrb[0].mxu0
        %v1328 = vadd.f32 1e-05, %v1327
        %v1329 = vpop.f32.mrb[0].mxu0
        %1330 = vmatprep.mubr.f32.mxu0 0.0
        %1331 = vmatmul.mubr.f32.gmra.mrb[0].mxu0 %v1234
        %v1332 = vpop.f32.mrb[0].mxu0
        %v1333 = vadd.f32 1e-05, %v1332
        %v1334 = vpop.f32.mrb[0].mxu0
        %1335 = vmatprep.mubr.f32.mxu0 0.0
        %1336 = vmatmul.mubr.f32.gmra.mrb[0].mxu0 %v1235
        %v1337 = vpop.f32.mrb[0].mxu0
        %v1338 = vadd.f32 1e-05, %v1337
        %v1339 = vpop.f32.mrb[0].mxu0
        %1340 = vdwg.mxu0
        %v1341 = vrsqrt.pop %v1303
        %v1342 = vrsqrt.pop %v1308
        %v1343 = vrsqrt.pop %v1313
        %v1344 = vrsqrt.pop %v1318
        %v1345 = vrsqrt.pop %v1323
        %v1346 = vrsqrt.pop %v1328
        %v1347 = vrsqrt.pop %v1333
        %v1348 = vrsqrt.pop %v1338
        %v1349 = vmul.f32 %v1220, %v1341
        %v1350 = vmul.f32 %v1221, %v1342
        %v1351 = vmul.f32 %v1222, %v1343
        %v1352 = vmul.f32 %v1223, %v1344
        %v1353 = vmul.f32 %v1224, %v1345
        %v1354 = vmul.f32 %v1225, %v1346
        %v1355 = vmul.f32 %v1226, %v1347
        %v1356 = vmul.f32 %v1227, %v1348
        %v1358 = vlaneseq
        %v1359 = vshrl.u32 %v1358, 7
        %v1360 = vsub.s32 0, %v1359
        %v1361 = vrot.slane %v1113, %v1360
        %v1363 = vmul.f32 %v1349, %v1361
        %v1364 = vmul.f32 %v1350, %v1361
        %v1365 = vmul.f32 %v1351, %v1361
        %v1366 = vmul.f32 %v1352, %v1361
        %v1367 = vmul.f32 %v1353, %v1361
        %v1368 = vmul.f32 %v1354, %v1361
        %v1369 = vmul.f32 %v1355, %v1361
        %v1370 = vmul.f32 %v1356, %v1361
        %v1372 = vlaneseq
        %v1373 = vshrl.u32 %v1372, 7
        %v1374 = vsub.s32 0, %v1373
        %v1375 = vrot.slane %v1114, %v1374
        %v1377 = vadd.f32 %v1363, %v1375
        %v1378 = vadd.f32 %v1364, %v1375
        %v1379 = vadd.f32 %v1365, %v1375
        %v1380 = vadd.f32 %v1366, %v1375
        %v1381 = vadd.f32 %v1367, %v1375
        %v1382 = vadd.f32 %v1368, %v1375
        %v1383 = vadd.f32 %v1369, %v1375
        %v1384 = vadd.f32 %v1370, %v1375
        %v1385 = vld [vmem:[#allocation8] sm:$0xf]
        %v1386 = vld [vmem:[#allocation8 + $0x4] sm:$0xf]
        %v1387 = vld [vmem:[#allocation8 + $0x8] sm:$0xf]
        %v1388 = vld [vmem:[#allocation8 + $0xc] sm:$0xf]
        %v1389 = vld [vmem:[#allocation8 + $0x10] sm:$0xf]
        %v1390 = vld [vmem:[#allocation8 + $0x14] sm:$0xf]
        %v1391 = vld [vmem:[#allocation8 + $0x18] sm:$0xf]
        %v1392 = vld [vmem:[#allocation8 + $0x1c] sm:$0xf]
        %v1393 = vld [vmem:[#allocation8 + $0x20] sm:$0xf]
        %v1394 = vld [vmem:[#allocation8 + $0x24] sm:$0xf]
        %v1395 = vld [vmem:[#allocation8 + $0x28] sm:$0xf]
        %v1396 = vld [vmem:[#allocation8 + $0x2c] sm:$0xf]
        %v1397 = vld [vmem:[#allocation8 + $0x30] sm:$0xf]
        %v1398 = vld [vmem:[#allocation8 + $0x34] sm:$0xf]
        %v1399 = vld [vmem:[#allocation8 + $0x38] sm:$0xf]
        %v1400 = vld [vmem:[#allocation8 + $0x3c] sm:$0xf]
        %v1401 = vld [vmem:[#allocation8 + $0x40] sm:$0xf]
        %v1402 = vld [vmem:[#allocation8 + $0x44] sm:$0xf]
        %v1403 = vld [vmem:[#allocation8 + $0x48] sm:$0xf]
        %v1404 = vld [vmem:[#allocation8 + $0x4c] sm:$0xf]
        %v1405 = vld [vmem:[#allocation8 + $0x50] sm:$0xf]
        %v1406 = vld [vmem:[#allocation8 + $0x54] sm:$0xf]
        %v1407 = vld [vmem:[#allocation8 + $0x58] sm:$0xf]
        %v1408 = vld [vmem:[#allocation8 + $0x5c] sm:$0xf]
        %v1409 = vld [vmem:[#allocation8 + $0x60] sm:$0xf]
        %v1410 = vld [vmem:[#allocation8 + $0x64] sm:$0xf]
        %v1411 = vld [vmem:[#allocation8 + $0x68] sm:$0xf]
        %v1412 = vld [vmem:[#allocation8 + $0x6c] sm:$0xf]
        %v1413 = vld [vmem:[#allocation8 + $0x70] sm:$0xf]
        %v1414 = vld [vmem:[#allocation8 + $0x74] sm:$0xf]
        %v1415 = vld [vmem:[#allocation8 + $0x78] sm:$0xf]
        %v1416 = vld [vmem:[#allocation8 + $0x7c] sm:$0xf]
        %v1449 = vunpack.c.l.b16 %v1385
        %v1450 = vunpack.c.l.b16 %v1386
        %v1451 = vunpack.c.l.b16 %v1387
        %v1452 = vunpack.c.l.b16 %v1388
        %v1453 = vunpack.c.l.b16 %v1389
        %v1454 = vunpack.c.l.b16 %v1390
        %v1455 = vunpack.c.l.b16 %v1391
        %v1456 = vunpack.c.l.b16 %v1392
        %v1457 = vunpack.c.l.b16 %v1393
        %v1458 = vunpack.c.l.b16 %v1394
        %v1459 = vunpack.c.l.b16 %v1395
        %v1460 = vunpack.c.l.b16 %v1396
        %v1461 = vunpack.c.l.b16 %v1397
        %v1462 = vunpack.c.l.b16 %v1398
        %v1463 = vunpack.c.l.b16 %v1399
        %v1464 = vunpack.c.l.b16 %v1400
        %v1465 = vunpack.c.l.b16 %v1401
        %v1466 = vunpack.c.l.b16 %v1402
        %v1467 = vunpack.c.l.b16 %v1403
        %v1468 = vunpack.c.l.b16 %v1404
        %v1469 = vunpack.c.l.b16 %v1405
        %v1470 = vunpack.c.l.b16 %v1406
        %v1471 = vunpack.c.l.b16 %v1407
        %v1472 = vunpack.c.l.b16 %v1408
        %v1473 = vunpack.c.l.b16 %v1409
        %v1474 = vunpack.c.l.b16 %v1410
        %v1475 = vunpack.c.l.b16 %v1411
        %v1476 = vunpack.c.l.b16 %v1412
        %v1477 = vunpack.c.l.b16 %v1413
        %v1478 = vunpack.c.l.b16 %v1414
        %v1479 = vunpack.c.l.b16 %v1415
        %v1480 = vunpack.c.l.b16 %v1416
        %v1481 = vpack.c.b16 %v1450, %v1449
        %v1482 = vpack.c.b16 %v1452, %v1451
        %v1483 = vpack.c.b16 %v1454, %v1453
        %v1484 = vpack.c.b16 %v1456, %v1455
        %v1485 = vpack.c.b16 %v1458, %v1457
        %v1486 = vpack.c.b16 %v1460, %v1459
        %v1487 = vpack.c.b16 %v1462, %v1461
        %v1488 = vpack.c.b16 %v1464, %v1463
        %v1489 = vpack.c.b16 %v1466, %v1465
        %v1490 = vpack.c.b16 %v1468, %v1467
        %v1491 = vpack.c.b16 %v1470, %v1469
        %v1492 = vpack.c.b16 %v1472, %v1471
        %v1493 = vpack.c.b16 %v1474, %v1473
        %v1494 = vpack.c.b16 %v1476, %v1475
        %v1495 = vpack.c.b16 %v1478, %v1477
        %v1496 = vpack.c.b16 %v1480, %v1479
        %1513 = vmatprep.subr.bf16.mxu0 0
        %1514 = vmatpush1.bf16.msra.mxu0 %v1481
        %1515 = vmatprep.subr.bf16.mxu0 0
        %1516 = vmatpush1.bf16.msra.mxu0 %v1482
        %1517 = vmatprep.subr.bf16.mxu0 0
        %1518 = vmatpush1.bf16.msra.mxu0 %v1483
        %1519 = vmatprep.subr.bf16.mxu0 0
        %1520 = vmatpush1.bf16.msra.mxu0 %v1484
        %1521 = vmatprep.subr.bf16.mxu0 0
        %1522 = vmatpush1.bf16.msra.mxu0 %v1485
        %1523 = vmatprep.subr.bf16.mxu0 0
        %1524 = vmatpush1.bf16.msra.mxu0 %v1486
        %1525 = vmatprep.subr.bf16.mxu0 0
        %1526 = vmatpush1.bf16.msra.mxu0 %v1487
        %1527 = vmatprep.subr.bf16.mxu0 0
        %1528 = vmatpush1.bf16.msra.mxu0 %v1488
        %1529 = vmatprep.subr.bf16.mxu0 0
        %1530 = vmatpush1.bf16.msra.mxu0 %v1489
        %1531 = vmatprep.subr.bf16.mxu0 0
        %1532 = vmatpush1.bf16.msra.mxu0 %v1490
        %1533 = vmatprep.subr.bf16.mxu0 0
        %1534 = vmatpush1.bf16.msra.mxu0 %v1491
        %1535 = vmatprep.subr.bf16.mxu0 0
        %1536 = vmatpush1.bf16.msra.mxu0 %v1492
        %1537 = vmatprep.subr.bf16.mxu0 0
        %1538 = vmatpush1.bf16.msra.mxu0 %v1493
        %1539 = vmatprep.subr.bf16.mxu0 0
        %1540 = vmatpush1.bf16.msra.mxu0 %v1494
        %1541 = vmatprep.subr.bf16.mxu0 0
        %1542 = vmatpush1.bf16.msra.mxu0 %v1495
        %1543 = vmatprep.subr.bf16.mxu0 0
        %1544 = vmatpush1.bf16.msra.mxu0 %v1496
        %1545 = vmatprep.mubr.bf16.mxu0 %v484
        %1546 = vmatmul.mubr.bf16.gmra.mrb[0].mxu0 %v483
        %v1547 = vpop.f32.mrb[0].mxu0
        %v1548 = vadd.f32 0.0, %v1547
        %v1549 = vpop.f32.mrb[0].mxu0
        %v1550 = vpop.f32.mrb[0].mxu0
        %v1551 = vadd.f32 0.0, %v1550
        %v1552 = vpop.f32.mrb[0].mxu0
        %1553 = vmatprep.mubr.bf16.mxu0 %v486
        %1554 = vmatmul.mubr.bf16.gmra.mrb[0].mxu0 %v485
        %v1555 = vpop.f32.mrb[0].mxu0
        %v1556 = vadd.f32 0.0, %v1555
        %v1557 = vpop.f32.mrb[0].mxu0
        %v1558 = vpop.f32.mrb[0].mxu0
        %v1559 = vadd.f32 0.0, %v1558
        %v1560 = vpop.f32.mrb[0].mxu0
        %1561 = vmatprep.mubr.bf16.mxu0 %v488
        %1562 = vmatmul.mubr.bf16.gmra.mrb[0].mxu0 %v487
        %v1563 = vpop.f32.mrb[0].mxu0
        %v1564 = vadd.f32 0.0, %v1563
        %v1565 = vpop.f32.mrb[0].mxu0
        %v1566 = vpop.f32.mrb[0].mxu0
        %v1567 = vadd.f32 0.0, %v1566
        %v1568 = vpop.f32.mrb[0].mxu0
        %1569 = vmatprep.mubr.bf16.mxu0 %v490
        %1570 = vmatmul.mubr.bf16.gmra.mrb[0].mxu0 %v489
        %v1571 = vpop.f32.mrb[0].mxu0
        %v1572 = vadd.f32 0.0, %v1571
        %v1573 = vpop.f32.mrb[0].mxu0
        %v1574 = vpop.f32.mrb[0].mxu0
        %v1575 = vadd.f32 0.0, %v1574
        %v1576 = vpop.f32.mrb[0].mxu0
        %1577 = vdwg.mxu0
        %v1578 = vld [vmem:[%s8] sm:$0x1]
        %v1579 = vld [vmem:[%s9] sm:$0x1]
        %1580 = vmatprep.subr.mxu0 0.0
        %1581 = vmatpush1.msra.mxu0 %v491
        %1582 = vmatprep.subr.mxu0 0.0
        %1583 = vmatpush1.msra.mxu0 %v492
        %1584 = vmatprep.subr.mxu0 0.0
        %1585 = vmatpush1.msra.mxu0 %v493
        %1586 = vmatprep.subr.mxu0 0.0
        %1587 = vmatpush1.msra.mxu0 %v494
        %1588 = vmatprep.subr.mxu0 0.0
        %1589 = vmatpush1.msra.mxu0 %v495
        %1590 = vmatprep.subr.mxu0 0.0
        %1591 = vmatpush1.msra.mxu0 %v496
        %1592 = vmatprep.subr.mxu0 0.0
        %1593 = vmatpush1.msra.mxu0 %v497
        %1594 = vmatprep.subr.mxu0 0.0
        %1595 = vmatpush1.msra.mxu0 %v498
        %1596 = vmatprep.subr.mxu0 0.0
        %1597 = vmatpush1.msra.mxu0 %v499
        %1598 = vmatprep.subr.mxu0 0.0
        %1599 = vmatpush1.msra.mxu0 %v500
        %1600 = vmatprep.subr.mxu0 0.0
        %1601 = vmatpush1.msra.mxu0 %v501
        %1602 = vmatprep.subr.mxu0 0.0
        %1603 = vmatpush1.msra.mxu0 %v502
        %1604 = vmatprep.subr.mxu0 0.0
        %1605 = vmatpush1.msra.mxu0 %v503
        %1606 = vmatprep.subr.mxu0 0.0
        %1607 = vmatpush1.msra.mxu0 %v504
        %1608 = vmatprep.subr.mxu0 0.0
        %1609 = vmatpush1.msra.mxu0 %v505
        %1610 = vmatprep.subr.mxu0 0.0
        %1611 = vmatpush1.msra.mxu0 %v506
        %1612 = vmatprep.subr.mxu0 0.0
        %1613 = vmatpush1.msra.mxu0 0.0
        %1614 = vmatprep.subr.mxu0 0.0
        %1615 = vmatpush1.msra.mxu0 0.0
        %1616 = vmatprep.subr.mxu0 0.0
        %1617 = vmatpush1.msra.mxu0 0.0
        %1618 = vmatprep.subr.mxu0 0.0
        %1619 = vmatpush1.msra.mxu0 0.0
        %1620 = vmatprep.subr.mxu0 0.0
        %1621 = vmatpush1.msra.mxu0 0.0
        %1622 = vmatprep.subr.mxu0 0.0
        %1623 = vmatpush1.msra.mxu0 0.0
        %1624 = vmatprep.subr.mxu0 0.0
        %1625 = vmatpush1.msra.mxu0 0.0
        %1626 = vmatprep.subr.mxu0 0.0
        %1627 = vmatpush1.msra.mxu0 0.0
        %1628 = vmatprep.subr.mxu0 0.0
        %1629 = vmatpush1.msra.mxu0 0.0
        %1630 = vmatprep.subr.mxu0 0.0
        %1631 = vmatpush1.msra.mxu0 0.0
        %1632 = vmatprep.subr.mxu0 0.0
        %1633 = vmatpush1.msra.mxu0 0.0
        %1634 = vmatprep.subr.mxu0 0.0
        %1635 = vmatpush1.msra.mxu0 0.0
        %1636 = vmatprep.subr.mxu0 0.0
        %1637 = vmatpush1.msra.mxu0 0.0
        %1638 = vmatprep.subr.mxu0 0.0
        %1639 = vmatpush1.msra.mxu0 0.0
        %1640 = vmatprep.subr.mxu0 0.0
        %1641 = vmatpush1.msra.mxu0 0.0
        %1642 = vmatprep.subr.mxu0 0.0
        %1643 = vmatpush1.msra.mxu0 0.0
        %1644 = vmatprep.mubr.f32.mxu0 0.0
        %1645 = vmatmul.mubr.f32.gmra.mrb[0].mxu0 %v1548
        %v1646 = vpop.f32.mrb[0].mxu0
        %v1647 = vadd.f32 0.0, %v1646
        %v1648 = vpop.f32.mrb[0].mxu0
        %1649 = vmatprep.mubr.f32.mxu0 0.0
        %1650 = vmatmul.mubr.f32.gmra.mrb[0].mxu0 %v1551
        %v1651 = vpop.f32.mrb[0].mxu0
        %v1652 = vadd.f32 0.0, %v1651
        %v1653 = vpop.f32.mrb[0].mxu0
        %1654 = vmatprep.mubr.f32.mxu0 0.0
        %1655 = vmatmul.mubr.f32.gmra.mrb[0].mxu0 %v1556
        %v1656 = vpop.f32.mrb[0].mxu0
        %v1657 = vadd.f32 0.0, %v1656
        %v1658 = vpop.f32.mrb[0].mxu0
        %1659 = vmatprep.mubr.f32.mxu0 0.0
        %1660 = vmatmul.mubr.f32.gmra.mrb[0].mxu0 %v1559
        %v1661 = vpop.f32.mrb[0].mxu0
        %v1662 = vadd.f32 0.0, %v1661
        %v1663 = vpop.f32.mrb[0].mxu0
        %1664 = vmatprep.mubr.f32.mxu0 0.0
        %1665 = vmatmul.mubr.f32.gmra.mrb[0].mxu0 %v1564
        %v1666 = vpop.f32.mrb[0].mxu0
        %v1667 = vadd.f32 0.0, %v1666
        %v1668 = vpop.f32.mrb[0].mxu0
        %1669 = vmatprep.mubr.f32.mxu0 0.0
        %1670 = vmatmul.mubr.f32.gmra.mrb[0].mxu0 %v1567
        %v1671 = vpop.f32.mrb[0].mxu0
        %v1672 = vadd.f32 0.0, %v1671
        %v1673 = vpop.f32.mrb[0].mxu0
        %1674 = vmatprep.mubr.f32.mxu0 0.0
        %1675 = vmatmul.mubr.f32.gmra.mrb[0].mxu0 %v1572
        %v1676 = vpop.f32.mrb[0].mxu0
        %v1677 = vadd.f32 0.0, %v1676
        %v1678 = vpop.f32.mrb[0].mxu0
        %1679 = vmatprep.mubr.f32.mxu0 0.0
        %1680 = vmatmul.mubr.f32.gmra.mrb[0].mxu0 %v1575
        %v1681 = vpop.f32.mrb[0].mxu0
        %v1682 = vadd.f32 0.0, %v1681
        %v1683 = vpop.f32.mrb[0].mxu0
        %1684 = vdwg.mxu0
        %v1685 = vsub.f32 %v1548, %v1647
        %v1686 = vsub.f32 %v1551, %v1652
        %v1687 = vsub.f32 %v1556, %v1657
        %v1688 = vsub.f32 %v1559, %v1662
        %v1689 = vsub.f32 %v1564, %v1667
        %v1690 = vsub.f32 %v1567, %v1672
        %v1691 = vsub.f32 %v1572, %v1677
        %v1692 = vsub.f32 %v1575, %v1682
        %v1693 = vmul.f32 %v1685, %v1685
        %v1694 = vmul.f32 %v1686, %v1686
        %v1695 = vmul.f32 %v1687, %v1687
        %v1696 = vmul.f32 %v1688, %v1688
        %v1697 = vmul.f32 %v1689, %v1689
        %v1698 = vmul.f32 %v1690, %v1690
        %v1699 = vmul.f32 %v1691, %v1691
        %v1700 = vmul.f32 %v1692, %v1692
        %1701 = vmatprep.subr.mxu0 0.0
        %1702 = vmatpush1.msra.mxu0 %v491
        %1703 = vmatprep.subr.mxu0 0.0
        %1704 = vmatpush1.msra.mxu0 %v492
        %1705 = vmatprep.subr.mxu0 0.0
        %1706 = vmatpush1.msra.mxu0 %v493
        %1707 = vmatprep.subr.mxu0 0.0
        %1708 = vmatpush1.msra.mxu0 %v494
        %1709 = vmatprep.subr.mxu0 0.0
        %1710 = vmatpush1.msra.mxu0 %v495
        %1711 = vmatprep.subr.mxu0 0.0
        %1712 = vmatpush1.msra.mxu0 %v496
        %1713 = vmatprep.subr.mxu0 0.0
        %1714 = vmatpush1.msra.mxu0 %v497
        %1715 = vmatprep.subr.mxu0 0.0
        %1716 = vmatpush1.msra.mxu0 %v498
        %1717 = vmatprep.subr.mxu0 0.0
        %1718 = vmatpush1.msra.mxu0 %v499
        %1719 = vmatprep.subr.mxu0 0.0
        %1720 = vmatpush1.msra.mxu0 %v500
        %1721 = vmatprep.subr.mxu0 0.0
        %1722 = vmatpush1.msra.mxu0 %v501
        %1723 = vmatprep.subr.mxu0 0.0
        %1724 = vmatpush1.msra.mxu0 %v502
        %1725 = vmatprep.subr.mxu0 0.0
        %1726 = vmatpush1.msra.mxu0 %v503
        %1727 = vmatprep.subr.mxu0 0.0
        %1728 = vmatpush1.msra.mxu0 %v504
        %1729 = vmatprep.subr.mxu0 0.0
        %1730 = vmatpush1.msra.mxu0 %v505
        %1731 = vmatprep.subr.mxu0 0.0
        %1732 = vmatpush1.msra.mxu0 %v506
        %1733 = vmatprep.subr.mxu0 0.0
        %1734 = vmatpush1.msra.mxu0 0.0
        %1735 = vmatprep.subr.mxu0 0.0
        %1736 = vmatpush1.msra.mxu0 0.0
        %1737 = vmatprep.subr.mxu0 0.0
        %1738 = vmatpush1.msra.mxu0 0.0
        %1739 = vmatprep.subr.mxu0 0.0
        %1740 = vmatpush1.msra.mxu0 0.0
        %1741 = vmatprep.subr.mxu0 0.0
        %1742 = vmatpush1.msra.mxu0 0.0
        %1743 = vmatprep.subr.mxu0 0.0
        %1744 = vmatpush1.msra.mxu0 0.0
        %1745 = vmatprep.subr.mxu0 0.0
        %1746 = vmatpush1.msra.mxu0 0.0
        %1747 = vmatprep.subr.mxu0 0.0
        %1748 = vmatpush1.msra.mxu0 0.0
        %1749 = vmatprep.subr.mxu0 0.0
        %1750 = vmatpush1.msra.mxu0 0.0
        %1751 = vmatprep.subr.mxu0 0.0
        %1752 = vmatpush1.msra.mxu0 0.0
        %1753 = vmatprep.subr.mxu0 0.0
        %1754 = vmatpush1.msra.mxu0 0.0
        %1755 = vmatprep.subr.mxu0 0.0
        %1756 = vmatpush1.msra.mxu0 0.0
        %1757 = vmatprep.subr.mxu0 0.0
        %1758 = vmatpush1.msra.mxu0 0.0
        %1759 = vmatprep.subr.mxu0 0.0
        %1760 = vmatpush1.msra.mxu0 0.0
        %1761 = vmatprep.subr.mxu0 0.0
        %1762 = vmatpush1.msra.mxu0 0.0
        %1763 = vmatprep.subr.mxu0 0.0
        %1764 = vmatpush1.msra.mxu0 0.0
        %1765 = vmatprep.mubr.f32.mxu0 0.0
        %1766 = vmatmul.mubr.f32.gmra.mrb[0].mxu0 %v1693
        %v1767 = vpop.f32.mrb[0].mxu0
        %v1768 = vadd.f32 1e-05, %v1767
        %v1769 = vpop.f32.mrb[0].mxu0
        %1770 = vmatprep.mubr.f32.mxu0 0.0
        %1771 = vmatmul.mubr.f32.gmra.mrb[0].mxu0 %v1694
        %v1772 = vpop.f32.mrb[0].mxu0
        %v1773 = vadd.f32 1e-05, %v1772
        %v1774 = vpop.f32.mrb[0].mxu0
        %1775 = vmatprep.mubr.f32.mxu0 0.0
        %1776 = vmatmul.mubr.f32.gmra.mrb[0].mxu0 %v1695
        %v1777 = vpop.f32.mrb[0].mxu0
        %v1778 = vadd.f32 1e-05, %v1777
        %v1779 = vpop.f32.mrb[0].mxu0
        %1780 = vmatprep.mubr.f32.mxu0 0.0
        %1781 = vmatmul.mubr.f32.gmra.mrb[0].mxu0 %v1696
        %v1782 = vpop.f32.mrb[0].mxu0
        %v1783 = vadd.f32 1e-05, %v1782
        %v1784 = vpop.f32.mrb[0].mxu0
        %1785 = vmatprep.mubr.f32.mxu0 0.0
        %1786 = vmatmul.mubr.f32.gmra.mrb[0].mxu0 %v1697
        %v1787 = vpop.f32.mrb[0].mxu0
        %v1788 = vadd.f32 1e-05, %v1787
        %v1789 = vpop.f32.mrb[0].mxu0
        %1790 = vmatprep.mubr.f32.mxu0 0.0
        %1791 = vmatmul.mubr.f32.gmra.mrb[0].mxu0 %v1698
        %v1792 = vpop.f32.mrb[0].mxu0
        %v1793 = vadd.f32 1e-05, %v1792
        %v1794 = vpop.f32.mrb[0].mxu0
        %1795 = vmatprep.mubr.f32.mxu0 0.0
        %1796 = vmatmul.mubr.f32.gmra.mrb[0].mxu0 %v1699
        %v1797 = vpop.f32.mrb[0].mxu0
        %v1798 = vadd.f32 1e-05, %v1797
        %v1799 = vpop.f32.mrb[0].mxu0
        %1800 = vmatprep.mubr.f32.mxu0 0.0
        %1801 = vmatmul.mubr.f32.gmra.mrb[0].mxu0 %v1700
        %v1802 = vpop.f32.mrb[0].mxu0
        %v1803 = vadd.f32 1e-05, %v1802
        %v1804 = vpop.f32.mrb[0].mxu0
        %1805 = vdwg.mxu0
        %v1806 = vrsqrt.pop %v1768
        %v1807 = vrsqrt.pop %v1773
        %v1808 = vrsqrt.pop %v1778
        %v1809 = vrsqrt.pop %v1783
        %v1810 = vrsqrt.pop %v1788
        %v1811 = vrsqrt.pop %v1793
        %v1812 = vrsqrt.pop %v1798
        %v1813 = vrsqrt.pop %v1803
        %v1814 = vmul.f32 %v1685, %v1806
        %v1815 = vmul.f32 %v1686, %v1807
        %v1816 = vmul.f32 %v1687, %v1808
        %v1817 = vmul.f32 %v1688, %v1809
        %v1818 = vmul.f32 %v1689, %v1810
        %v1819 = vmul.f32 %v1690, %v1811
        %v1820 = vmul.f32 %v1691, %v1812
        %v1821 = vmul.f32 %v1692, %v1813
        %v1823 = vlaneseq
        %v1824 = vshrl.u32 %v1823, 7
        %v1825 = vsub.s32 0, %v1824
        %v1826 = vrot.slane %v1578, %v1825
        %v1828 = vmul.f32 %v1814, %v1826
        %v1829 = vmul.f32 %v1815, %v1826
        %v1830 = vmul.f32 %v1816, %v1826
        %v1831 = vmul.f32 %v1817, %v1826
        %v1832 = vmul.f32 %v1818, %v1826
        %v1833 = vmul.f32 %v1819, %v1826
        %v1834 = vmul.f32 %v1820, %v1826
        %v1835 = vmul.f32 %v1821, %v1826
        %v1837 = vlaneseq
        %v1838 = vshrl.u32 %v1837, 7
        %v1839 = vsub.s32 0, %v1838
        %v1840 = vrot.slane %v1579, %v1839
        %v1842 = vadd.f32 %v1828, %v1840
        %v1843 = vadd.f32 %v1829, %v1840
        %v1844 = vadd.f32 %v1830, %v1840
        %v1845 = vadd.f32 %v1831, %v1840
        %v1846 = vadd.f32 %v1832, %v1840
        %v1847 = vadd.f32 %v1833, %v1840
        %v1848 = vadd.f32 %v1834, %v1840
        %v1849 = vadd.f32 %v1835, %v1840
        %v1850 = vadd.f32 %v1377, %v1842
        %v1851 = vadd.f32 %v1378, %v1843
        %v1852 = vadd.f32 %v1379, %v1844
        %v1853 = vadd.f32 %v1380, %v1845
        %v1854 = vadd.f32 %v1381, %v1846
        %v1855 = vadd.f32 %v1382, %v1847
        %v1856 = vadd.f32 %v1383, %v1848
        %v1857 = vadd.f32 %v1384, %v1849
        %v1858 = vmax.f32 %v1850, 0.0
        %v1859 = vmax.f32 %v1851, 0.0
        %v1860 = vmax.f32 %v1852, 0.0
        %v1861 = vmax.f32 %v1853, 0.0
        %v1862 = vmax.f32 %v1854, 0.0
        %v1863 = vmax.f32 %v1855, 0.0
        %v1864 = vmax.f32 %v1856, 0.0
        %v1865 = vmax.f32 %v1857, 0.0
        %1866 = vst [vmem:[%s463] sm:$0xff] %v1858
        %1867 = vst [vmem:[%s463 + $0x8] sm:$0xff] %v1859
        %1868 = vst [vmem:[%s463 + $0x10] sm:$0xff] %v1860
        %1869 = vst [vmem:[%s463 + $0x18] sm:$0xff] %v1861
        %1870 = vst [vmem:[%s463 + $0x20] sm:$0xff] %v1862
        %1871 = vst [vmem:[%s463 + $0x28] sm:$0xff] %v1863
        %1872 = vst [vmem:[%s463 + $0x30] sm:$0xff] %v1864
        %1873 = vst [vmem:[%s463 + $0x38] sm:$0xff] %v1865
        %s1874 = sand.u32 %s274, 1
        %s1875 = scalar_lea.sflag [#allocation4], %s1874
        %s1876 = sand.u32 %s274, 1
        %s1877 = smul.addr %s1876, 64
        %s1878 = scalar_lea.vmem [#allocation11], %s1877
        // Predicated region
        $region85: #{tpu_custom_call.1} parent=63 // pred_check
          %p1879 = pneg %p284
        $region86: #{tpu_custom_call.1} parent=63 // pred_check_branch
          %1881 = sbr.rel (%p1879) target = $region88
        $region87: #{tpu_custom_call.1} parent=63 // pred_region
          %s1882 = smul.u32 8, %s30
          %s1884 = ssub.s32 1024, 1024
          %1885 = vsyncadd %s1875, %s1884
          %s1886 = smul.addr %s1882, 128
          %s1887 = scalar_lea.hbm %s11, %s1886
          %s1888 = sshll.u32 %s1878, 4
          %s1889 = int_to_ptr.vmem [resolvable:$true] %s1888
          %1894 = dma.vmem_to_hbm [thread:$0]  %s1889, 1024, %s1887, %s1875, 128, 128, 8
        $region88: #{tpu_custom_call.1} parent=63 // pred_fallthru
          _
      $region64: #{tpu_custom_call.1} parent=5 // pred_fallthru
        _
      %p1895 = scmp.le.s32.totalorder 2, %s25
      // Predicated region
      $region89: #{tpu_custom_call.1} parent=5 // pred_check
        %p1896 = pneg %p1895
      $region90: #{tpu_custom_call.1} parent=5 // pred_check_branch
        %1898 = sbr.rel (%p1896) target = $region92
      $region91: #{tpu_custom_call.1} parent=5 // pred_region
        %s1899 = ssub.s32 %s25, 2
        // Predicated region
        $region93: #{tpu_custom_call.1} parent=91 // pred_check
          %p1900 = pneg %p290
        $region94: #{tpu_custom_call.1} parent=91 // pred_check_branch
          %1902 = sbr.rel (%p1900) target = $region96
        $region95: #{tpu_custom_call.1} parent=91 // pred_region
          %s1903 = sand.u32 %s275, 1
          %s1904 = scalar_lea.sflag [#allocation4], %s1903
          %s1905 = sand.u32 %s275, 1
          %s1906 = smul.addr %s1905, 64
          %s1907 = scalar_lea.vmem [#allocation11], %s1906
          %1908 = dma.done %s1904, 1024
        $region96: #{tpu_custom_call.1} parent=91 // pred_fallthru
          _
      $region92: #{tpu_custom_call.1} parent=5 // pred_fallthru
        _
    $region6: #{tpu_custom_call.1} parent=1 // loop_footer
      %s29 = sadd.s32 1, %s25
    $region7: #{tpu_custom_call.1} parent=1 // loop_footer_branch
      %24 = sbr.rel target = $region3
    $region8: #{tpu_custom_call.1} parent=1 // loop_exit
      _
    %1909 = vsyncpa [#allocation3], 1
    %s1910 = scalar_lea.sflag [#allocation3], 1
    %1911 = vsyncpa %s1910, 1
    %1912 = vsyncpa [#allocation6], 1
    %1913 = vsyncpa [#allocation9], 1
    %1914 = vsyncpa [#allocation4], 1
    %s1915 = scalar_lea.sflag [#allocation4], 1
    %1916 = vsyncpa %s1915, 1

</llo_original>
